<compile_context>
chip_gen: v6e
topology: v6e:2x2x1
jax: 0.10.0
libtpu: 0.0.40
codegen_flags: <defaults>
</compile_context>

<pallas_src>
import math
import functools

import jax
import jax.numpy as jnp
from jax import lax
from jax.experimental import pallas as pl
from jax.experimental.pallas import tpu as pltpu  # noqa: F401

# ----------------------------- configuration -------------------------------
B = 2            # batch
N = 8            # sequence length (<= time_dim)
D_IN = 16        # input_dim
D = 32           # d_model
N_HEAD = 2
HEAD_DIM = D // N_HEAD
D_FF = 64        # d_inner
N_LAYERS = 2
EPS = 1e-5
T = B * N        # total tokens
LANES = 128
NEG_INF = -1e30  # large finite negative (never -inf: avoids inf-inf = NaN)

# ------------------------- packed-parameter layout --------------------------
# Matrix slab: (MAT_ROWS, 128) f32. Row offsets (all 8-aligned):
M_WIN = 0                          # (D_IN, D)   input proj, transposed
M_INB = M_WIN + D_IN               # (T, D)      pos_embedding + input bias, tiled
M_MASK = M_INB + T                 # (T, T)      block-diagonal attention mask
MAT_LAYER0 = M_MASK + T
M_WQKV = 0                         # (D, 3D)     fused q|k|v proj (Q pre-scaled)
M_OWT = M_WQKV + D                 # (D, D)      out proj, transposed (head-major rows)
M_F1T = M_OWT + D                  # (D, D_FF)
M_F2T = M_F1T + D                  # (D_FF, D)
MAT_PER_LAYER = M_F2T + D_FF
MAT_ROWS = MAT_LAYER0 + N_LAYERS * MAT_PER_LAYER

# Vector slab: (VEC_ROWS, 128) f32, one vector per row:
V_BQKV, V_OB, V_LN1W, V_LN1B, V_F1B, V_F2B, V_LN2W, V_LN2B = range(8)
VEC_PER_LAYER = 8
VEC_FINAL = N_LAYERS * VEC_PER_LAYER       # final-LayerNorm weight / bias rows
VEC_ROWS = VEC_FINAL + 2


def _ln(y, w, b):
    # Variance as E[x^2] - E[x]^2: the two lane reductions are independent.
    mu = jnp.mean(y, axis=-1, keepdims=True)
    mu2 = jnp.mean(y * y, axis=-1, keepdims=True)
    var = mu2 - mu * mu
    return (y - mu) * lax.rsqrt(var + EPS) * w + b


# ------------------------------- kernel ------------------------------------
def vit_extractor_kernel(x_ref, mats_ref, vecs_ref, out_ref):
    f32 = jnp.float32

    def mat(row, nrows, ncols):
        return mats_ref[row:row + nrows, 0:ncols]

    def vec(row, ncols):
        return vecs_ref[row:row + 1, 0:ncols]

    mask = mat(M_MASK, T, T)                                      # (T, T)

    # input projection + positional embedding (dropout == identity in eval)
    h = jnp.dot(x_ref[...], mat(M_WIN, D_IN, D),
                preferred_element_type=f32) + mat(M_INB, T, D)    # (T, D)

    for l in range(N_LAYERS):
        mb = MAT_LAYER0 + l * MAT_PER_LAYER
        vb = l * VEC_PER_LAYER

        # ---- multi-head self attention: one fused QKV matmul ----
        qkv = jnp.dot(h, mat(mb + M_WQKV, D, 3 * D),
                      preferred_element_type=f32) + vec(vb + V_BQKV, 3 * D)

        attn = None
        for hh in range(N_HEAD):
            c = hh * HEAD_DIM
            q = qkv[:, c:c + HEAD_DIM]              # Q pre-scaled by 1/sqrt(Dh)
            k = qkv[:, D + c:D + c + HEAD_DIM]
            v = qkv[:, 2 * D + c:2 * D + c + HEAD_DIM]

            # scores: q @ k^T without an explicit transpose (contract minor dims)
            s = lax.dot_general(q, k, (((1,), (1,)), ((), ())),
                                preferred_element_type=f32) + mask
            s = s - jnp.max(s, axis=-1, keepdims=True)
            p = jnp.exp(s)
            p = p * pl.reciprocal(jnp.sum(p, axis=-1, keepdims=True),
                                  approx=True)
            o = jnp.dot(p, v, preferred_element_type=f32)         # (T, Dh)

            # head merge via per-head out-proj partial sums (no concatenate)
            part = jnp.dot(o, mat(mb + M_OWT + c, HEAD_DIM, D),
                           preferred_element_type=f32)
            attn = part if attn is None else attn + part
        attn = attn + vec(vb + V_OB, D)

        # post-norm residual 1
        h = _ln(h + attn, vec(vb + V_LN1W, D), vec(vb + V_LN1B, D))

        # ---- feed forward (ReLU) ----
        ff = jnp.dot(h, mat(mb + M_F1T, D, D_FF),
                     preferred_element_type=f32) + vec(vb + V_F1B, D_FF)
        ff = jnp.maximum(ff, 0.0)
        ff = jnp.dot(ff, mat(mb + M_F2T, D_FF, D),
                     preferred_element_type=f32) + vec(vb + V_F2B, D)

        # post-norm residual 2
        h = _ln(h + ff, vec(vb + V_LN2W, D), vec(vb + V_LN2B, D))

    # final encoder LayerNorm
    h = _ln(h, vec(VEC_FINAL, D), vec(VEC_FINAL + 1, D))

    # max over sequence: per-batch 8-row sublane-tile reductions
    for b in range(B):
        out_ref[b:b + 1, :] = jnp.max(h[b * N:(b + 1) * N, :], axis=0,
                                      keepdims=True)


# --------------------- wrapper-side parameter packing ------------------------
def _prep_params(params):
    """Trace-time constant folding & packing into two lane-aligned slabs."""
    (w_in, b_in, pos, ipw, ipb, ow, ob, ln1w, ln1b,
     f1w, f1b, f2w, f2b, ln2w, ln2b, lnfw, lnfb) = params
    scale = 1.0 / math.sqrt(HEAD_DIM)

    mats = jnp.zeros((MAT_ROWS, LANES), jnp.float32)
    vecs = jnp.zeros((VEC_ROWS, LANES), jnp.float32)

    # input projection (transposed) and pos_embedding + bias (tiled over batch)
    mats = mats.at[M_WIN:M_WIN + D_IN, 0:D].set(w_in.T)
    in_bias = jnp.tile(pos + b_in.reshape(1, D), (B, 1))         # (T, D)
    mats = mats.at[M_INB:M_INB + T, 0:D].set(in_bias)

    # block-diagonal attention mask (tokens attend only within their sample)
    ids = jnp.arange(T) // N
    mask = jnp.where(ids[:, None] == ids[None, :], 0.0, NEG_INF)
    mats = mats.at[M_MASK:M_MASK + T, 0:T].set(mask.astype(jnp.float32))

    for l in range(N_LAYERS):
        mb = MAT_LAYER0 + l * MAT_PER_LAYER
        vb = l * VEC_PER_LAYER

        # fused QKV: PyTorch in_proj_weight is (3D, D); transposed -> (D, 3D)
        wqkv_t = ipw[l].T
        wqkv_t = wqkv_t.at[:, 0:D].multiply(scale)       # fold 1/sqrt(Dh) into Q
        mats = mats.at[mb + M_WQKV:mb + M_WQKV + D, 0:3 * D].set(wqkv_t)
        bqkv = ipb[l].at[0:D].multiply(scale)
        vecs = vecs.at[vb + V_BQKV, 0:3 * D].set(bqkv)

        mats = mats.at[mb + M_OWT:mb + M_OWT + D, 0:D].set(ow[l].T)
        mats = mats.at[mb + M_F1T:mb + M_F1T + D, 0:D_FF].set(f1w[l].T)
        mats = mats.at[mb + M_F2T:mb + M_F2T + D_FF, 0:D].set(f2w[l].T)

        vecs = vecs.at[vb + V_OB, 0:D].set(ob[l])
        vecs = vecs.at[vb + V_LN1W, 0:D].set(ln1w[l])
        vecs = vecs.at[vb + V_LN1B, 0:D].set(ln1b[l])
        vecs = vecs.at[vb + V_F1B, 0:D_FF].set(f1b[l])
        vecs = vecs.at[vb + V_F2B, 0:D].set(f2b[l])
        vecs = vecs.at[vb + V_LN2W, 0:D].set(ln2w[l])
        vecs = vecs.at[vb + V_LN2B, 0:D].set(ln2b[l])

    vecs = vecs.at[VEC_FINAL, 0:D].set(lnfw[0])
    vecs = vecs.at[VEC_FINAL + 1, 0:D].set(lnfb[0])
    return mats, vecs


def vit_extractor(x, params):
    mats, vecs = _prep_params(params)
    x_flat = x.reshape(T, D_IN)          # wrapper-side reshape: free plumbing
    # Single gridless invocation: 3 prologue DMAs total, whole model resident
    # in VMEM. For large B on v7x, add a leading "parallel" batch grid axis.
    return pl.pallas_call(
        vit_extractor_kernel,
        out_shape=jax.ShapeDtypeStruct((B, D), jnp.float32),
    )(x_flat, mats, vecs)


# ----------------------- pure-JAX reference (for checking) ------------------
def _ref_layer_norm(y, w, b):
    mu = jnp.mean(y, axis=-1, keepdims=True)
    var = jnp.mean((y - mu) ** 2, axis=-1, keepdims=True)
    return (y - mu) * lax.rsqrt(var + EPS) * w + b


def _ref_single(x, params):
    (w_in, b_in, pos, ipw, ipb, ow, ob, ln1w, ln1b,
     f1w, f1b, f2w, f2b, ln2w, ln2b, lnfw, lnfb) = params
    h = x @ w_in.T + b_in[0] + pos
    scale = 1.0 / math.sqrt(HEAD_DIM)
    for l in range(N_LAYERS):
        qkv = h @ ipw[l].T + ipb[l]
        q, k, v = qkv[:, :D], qkv[:, D:2 * D], qkv[:, 2 * D:]
        heads = []
        for hh in range(N_HEAD):
            sl = slice(hh * HEAD_DIM, (hh + 1) * HEAD_DIM)
            s = (q[:, sl] * scale) @ k[:, sl].T
            p = jax.nn.softmax(s, axis=-1)
            heads.append(p @ v[:, sl])
        attn = jnp.concatenate(heads, axis=-1) @ ow[l].T + ob[l]
        h = _ref_layer_norm(h + attn, ln1w[l], ln1b[l])
        ff = jnp.maximum(h @ f1w[l].T + f1b[l], 0.0) @ f2w[l].T + f2b[l]
        h = _ref_layer_norm(h + ff, ln2w[l], ln2b[l])
    h = _ref_layer_norm(h, lnfw[0], lnfb[0])
    return jnp.max(h, axis=0)


# ------------------------------ parameter init -------------------------------
def init_params(key):
    ks = jax.random.split(key, 20)
    s = 0.1
    w_in = jax.random.normal(ks[0], (D, D_IN), jnp.float32) * s
    b_in = jax.random.normal(ks[1], (1, D), jnp.float32) * s
    pos = jax.random.normal(ks[2], (N, D), jnp.float32) * s
    ipw = jax.random.normal(ks[3], (N_LAYERS, 3 * D, D), jnp.float32) * s
    ipb = jax.random.normal(ks[4], (N_LAYERS, 3 * D), jnp.float32) * s
    ow = jax.random.normal(ks[5], (N_LAYERS, D, D), jnp.float32) * s
    ob = jax.random.normal(ks[6], (N_LAYERS, D), jnp.float32) * s
    ln1w = jnp.ones((N_LAYERS, D), jnp.float32)
    ln1b = jnp.zeros((N_LAYERS, D), jnp.float32)
    f1w = jax.random.normal(ks[7], (N_LAYERS, D_FF, D), jnp.float32) * s
    f1b = jax.random.normal(ks[8], (N_LAYERS, D_FF), jnp.float32) * s
    f2w = jax.random.normal(ks[9], (N_LAYERS, D, D_FF), jnp.float32) * s
    f2b = jax.random.normal(ks[10], (N_LAYERS, D), jnp.float32) * s
    ln2w = jnp.ones((N_LAYERS, D), jnp.float32)
    ln2b = jnp.zeros((N_LAYERS, D), jnp.float32)
    lnfw = jnp.ones((1, D), jnp.float32)
    lnfb = jnp.zeros((1, D), jnp.float32)
    return (w_in, b_in, pos, ipw, ipb, ow, ob, ln1w, ln1b,
            f1w, f1b, f2w, f2b, ln2w, ln2b, lnfw, lnfb)


if __name__ == "__main__":
    key = jax.random.PRNGKey(0)
    k_x, k_p = jax.random.split(key)
    x = jax.random.normal(k_x, (B, N, D_IN), jnp.float32)
    params = init_params(k_p)

    out = jax.jit(vit_extractor)(x, params)
    out = jax.block_until_ready(out)
    assert out.shape == (B, D), out.shape

    ref = jax.vmap(functools.partial(_ref_single, params=params))(x)
    assert jnp.allclose(out, ref, atol=3e-3, rtol=3e-3), (
        float(jnp.max(jnp.abs(out - ref))))

    print("KERNEL_OK")
</pallas_src>

<mosaic_0001>
module attributes {stable_mosaic.version = 11 : i64} {
  func.func @vit_extractor_kernel(%arg0: memref<16x16xf32, #tpu.memory_space<vmem>>, %arg1: memref<368x128xf32, #tpu.memory_space<vmem>>, %arg2: memref<18x128xf32, #tpu.memory_space<vmem>>, %arg3: memref<2x32xf32, #tpu.memory_space<vmem>>) attributes {dimension_semantics = [], scalar_prefetch = 0 : i64, scratch_operands = 0 : i64, tpu.core_type = #tpu.core_type<tc>} {
    %c32 = arith.constant 32 : index
    %c0 = arith.constant 0 : index
    %0 = vector.load %arg1[%c32, %c0] : memref<368x128xf32, #tpu.memory_space<vmem>>, vector<16x16xf32>
    %c0_0 = arith.constant 0 : index
    %c0_1 = arith.constant 0 : index
    %1 = vector.load %arg0[%c0_0, %c0_1] : memref<16x16xf32, #tpu.memory_space<vmem>>, vector<16x16xf32>
    %c0_2 = arith.constant 0 : index
    %c0_3 = arith.constant 0 : index
    %2 = vector.load %arg1[%c0_2, %c0_3] : memref<368x128xf32, #tpu.memory_space<vmem>>, vector<16x32xf32>
    %cst = arith.constant dense<0.000000e+00> : vector<16x32xf32>
    %3 = tpu.matmul %1, %2, %cst {dimension_numbers = #tpu.dot_dimension_numbers<[1], [0], [0], [1], [0, 0, 1, 1], [], []>} : vector<16x16xf32>, vector<16x32xf32>, vector<16x32xf32> -> vector<16x32xf32>
    %c16 = arith.constant 16 : index
    %c0_4 = arith.constant 0 : index
    %4 = vector.load %arg1[%c16, %c0_4] : memref<368x128xf32, #tpu.memory_space<vmem>>, vector<16x32xf32>
    %5 = arith.addf %3, %4 : vector<16x32xf32>
    %c48 = arith.constant 48 : index
    %c0_5 = arith.constant 0 : index
    %6 = vector.load %arg1[%c48, %c0_5] : memref<368x128xf32, #tpu.memory_space<vmem>>, vector<32x96xf32>
    %cst_6 = arith.constant dense<0.000000e+00> : vector<16x96xf32>
    %7 = tpu.matmul %5, %6, %cst_6 {dimension_numbers = #tpu.dot_dimension_numbers<[1], [0], [0], [1], [0, 0, 1, 1], [], []>} : vector<16x32xf32>, vector<32x96xf32>, vector<16x96xf32> -> vector<16x96xf32>
    %c0_7 = arith.constant 0 : index
    %c0_8 = arith.constant 0 : index
    %8 = vector.load %arg2[%c0_7, %c0_8] : memref<18x128xf32, #tpu.memory_space<vmem>>, vector<1x96xf32>
    %9 = vector.broadcast %8 : vector<1x96xf32> to vector<16x96xf32>
    %10 = arith.addf %7, %9 : vector<16x96xf32>
    %11 = vector.extract_strided_slice %10 {offsets = [0, 0], sizes = [16, 16], strides = [1, 1]} : vector<16x96xf32> to vector<16x16xf32>
    %12 = vector.extract_strided_slice %10 {offsets = [0, 32], sizes = [16, 16], strides = [1, 1]} : vector<16x96xf32> to vector<16x16xf32>
    %13 = vector.extract_strided_slice %10 {offsets = [0, 64], sizes = [16, 16], strides = [1, 1]} : vector<16x96xf32> to vector<16x16xf32>
    %cst_9 = arith.constant dense<0.000000e+00> : vector<16x16xf32>
    %14 = tpu.matmul %11, %12, %cst_9 {dimension_numbers = #tpu.dot_dimension_numbers<[1], [1], [0], [0], [0, 0, 1, 0], [], []>} : vector<16x16xf32>, vector<16x16xf32>, vector<16x16xf32> -> vector<16x16xf32>
    %15 = arith.addf %14, %0 : vector<16x16xf32>
    %cst_10 = arith.constant dense<0xFF800000> : vector<16xf32>
    %16 = vector.multi_reduction <maximumf>, %15, %cst_10 [1] : vector<16x16xf32> to vector<16xf32>
    %17 = vector.shape_cast %16 : vector<16xf32> to vector<16x1xf32>
    %18 = vector.broadcast %17 : vector<16x1xf32> to vector<16x16xf32>
    %19 = arith.subf %15, %18 : vector<16x16xf32>
    %20 = math.exp %19 : vector<16x16xf32>
    %cst_11 = arith.constant dense<0.000000e+00> : vector<16xf32>
    %21 = vector.multi_reduction <add>, %20, %cst_11 [1] : vector<16x16xf32> to vector<16xf32>
    %22 = vector.shape_cast %21 : vector<16xf32> to vector<16x1xf32>
    %23 = tpu.reciprocal %22 {approx = true} : vector<16x1xf32> -> vector<16x1xf32>
    %24 = vector.broadcast %23 : vector<16x1xf32> to vector<16x16xf32>
    %25 = arith.mulf %20, %24 : vector<16x16xf32>
    %cst_12 = arith.constant dense<0.000000e+00> : vector<16x16xf32>
    %26 = tpu.matmul %25, %13, %cst_12 {dimension_numbers = #tpu.dot_dimension_numbers<[1], [0], [0], [1], [0, 0, 1, 1], [], []>} : vector<16x16xf32>, vector<16x16xf32>, vector<16x16xf32> -> vector<16x16xf32>
    %c80 = arith.constant 80 : index
    %c0_13 = arith.constant 0 : index
    %27 = vector.load %arg1[%c80, %c0_13] : memref<368x128xf32, #tpu.memory_space<vmem>>, vector<16x32xf32>
    %cst_14 = arith.constant dense<0.000000e+00> : vector<16x32xf32>
    %28 = tpu.matmul %26, %27, %cst_14 {dimension_numbers = #tpu.dot_dimension_numbers<[1], [0], [0], [1], [0, 0, 1, 1], [], []>} : vector<16x16xf32>, vector<16x32xf32>, vector<16x32xf32> -> vector<16x32xf32>
    %29 = vector.extract_strided_slice %10 {offsets = [0, 16], sizes = [16, 16], strides = [1, 1]} : vector<16x96xf32> to vector<16x16xf32>
    %30 = vector.extract_strided_slice %10 {offsets = [0, 48], sizes = [16, 16], strides = [1, 1]} : vector<16x96xf32> to vector<16x16xf32>
    %31 = vector.extract_strided_slice %10 {offsets = [0, 80], sizes = [16, 16], strides = [1, 1]} : vector<16x96xf32> to vector<16x16xf32>
    %cst_15 = arith.constant dense<0.000000e+00> : vector<16x16xf32>
    %32 = tpu.matmul %29, %30, %cst_15 {dimension_numbers = #tpu.dot_dimension_numbers<[1], [1], [0], [0], [0, 0, 1, 0], [], []>} : vector<16x16xf32>, vector<16x16xf32>, vector<16x16xf32> -> vector<16x16xf32>
    %33 = arith.addf %32, %0 : vector<16x16xf32>
    %cst_16 = arith.constant dense<0xFF800000> : vector<16xf32>
    %34 = vector.multi_reduction <maximumf>, %33, %cst_16 [1] : vector<16x16xf32> to vector<16xf32>
    %35 = vector.shape_cast %34 : vector<16xf32> to vector<16x1xf32>
    %36 = vector.broadcast %35 : vector<16x1xf32> to vector<16x16xf32>
    %37 = arith.subf %33, %36 : vector<16x16xf32>
    %38 = math.exp %37 : vector<16x16xf32>
    %cst_17 = arith.constant dense<0.000000e+00> : vector<16xf32>
    %39 = vector.multi_reduction <add>, %38, %cst_17 [1] : vector<16x16xf32> to vector<16xf32>
    %40 = vector.shape_cast %39 : vector<16xf32> to vector<16x1xf32>
    %41 = tpu.reciprocal %40 {approx = true} : vector<16x1xf32> -> vector<16x1xf32>
    %42 = vector.broadcast %41 : vector<16x1xf32> to vector<16x16xf32>
    %43 = arith.mulf %38, %42 : vector<16x16xf32>
    %cst_18 = arith.constant dense<0.000000e+00> : vector<16x16xf32>
    %44 = tpu.matmul %43, %31, %cst_18 {dimension_numbers = #tpu.dot_dimension_numbers<[1], [0], [0], [1], [0, 0, 1, 1], [], []>} : vector<16x16xf32>, vector<16x16xf32>, vector<16x16xf32> -> vector<16x16xf32>
    %c96 = arith.constant 96 : index
    %c0_19 = arith.constant 0 : index
    %45 = vector.load %arg1[%c96, %c0_19] : memref<368x128xf32, #tpu.memory_space<vmem>>, vector<16x32xf32>
    %cst_20 = arith.constant dense<0.000000e+00> : vector<16x32xf32>
    %46 = tpu.matmul %44, %45, %cst_20 {dimension_numbers = #tpu.dot_dimension_numbers<[1], [0], [0], [1], [0, 0, 1, 1], [], []>} : vector<16x16xf32>, vector<16x32xf32>, vector<16x32xf32> -> vector<16x32xf32>
    %47 = arith.addf %28, %46 : vector<16x32xf32>
    %c1 = arith.constant 1 : index
    %c0_21 = arith.constant 0 : index
    %48 = vector.load %arg2[%c1, %c0_21] : memref<18x128xf32, #tpu.memory_space<vmem>>, vector<1x32xf32>
    %49 = vector.broadcast %48 : vector<1x32xf32> to vector<16x32xf32>
    %50 = arith.addf %47, %49 : vector<16x32xf32>
    %51 = arith.addf %5, %50 : vector<16x32xf32>
    %c2 = arith.constant 2 : index
    %c0_22 = arith.constant 0 : index
    %52 = vector.load %arg2[%c2, %c0_22] : memref<18x128xf32, #tpu.memory_space<vmem>>, vector<1x32xf32>
    %c3 = arith.constant 3 : index
    %c0_23 = arith.constant 0 : index
    %53 = vector.load %arg2[%c3, %c0_23] : memref<18x128xf32, #tpu.memory_space<vmem>>, vector<1x32xf32>
    %cst_24 = arith.constant dense<0.000000e+00> : vector<16xf32>
    %54 = vector.multi_reduction <add>, %51, %cst_24 [1] : vector<16x32xf32> to vector<16xf32>
    %55 = vector.shape_cast %54 : vector<16xf32> to vector<16x1xf32>
    %cst_25 = arith.constant 3.200000e+01 : f32
    %56 = vector.broadcast %cst_25 : f32 to vector<16x1xf32>
    %57 = arith.divf %55, %56 : vector<16x1xf32>
    %58 = arith.mulf %51, %51 : vector<16x32xf32>
    %cst_26 = arith.constant dense<0.000000e+00> : vector<16xf32>
    %59 = vector.multi_reduction <add>, %58, %cst_26 [1] : vector<16x32xf32> to vector<16xf32>
    %60 = vector.shape_cast %59 : vector<16xf32> to vector<16x1xf32>
    %cst_27 = arith.constant 3.200000e+01 : f32
    %61 = vector.broadcast %cst_27 : f32 to vector<16x1xf32>
    %62 = arith.divf %60, %61 : vector<16x1xf32>
    %63 = arith.mulf %57, %57 : vector<16x1xf32>
    %64 = arith.subf %62, %63 : vector<16x1xf32>
    %65 = vector.broadcast %57 : vector<16x1xf32> to vector<16x32xf32>
    %66 = arith.subf %51, %65 : vector<16x32xf32>
    %cst_28 = arith.constant 9.99999974E-6 : f32
    %67 = vector.broadcast %cst_28 : f32 to vector<16x1xf32>
    %68 = arith.addf %64, %67 : vector<16x1xf32>
    %69 = math.rsqrt %68 : vector<16x1xf32>
    %70 = vector.broadcast %69 : vector<16x1xf32> to vector<16x32xf32>
    %71 = arith.mulf %66, %70 : vector<16x32xf32>
    %72 = vector.broadcast %52 : vector<1x32xf32> to vector<16x32xf32>
    %73 = arith.mulf %71, %72 : vector<16x32xf32>
    %74 = vector.broadcast %53 : vector<1x32xf32> to vector<16x32xf32>
    %75 = arith.addf %73, %74 : vector<16x32xf32>
    %c112 = arith.constant 112 : index
    %c0_29 = arith.constant 0 : index
    %76 = vector.load %arg1[%c112, %c0_29] : memref<368x128xf32, #tpu.memory_space<vmem>>, vector<32x64xf32>
    %cst_30 = arith.constant dense<0.000000e+00> : vector<16x64xf32>
    %77 = tpu.matmul %75, %76, %cst_30 {dimension_numbers = #tpu.dot_dimension_numbers<[1], [0], [0], [1], [0, 0, 1, 1], [], []>} : vector<16x32xf32>, vector<32x64xf32>, vector<16x64xf32> -> vector<16x64xf32>
    %c4 = arith.constant 4 : index
    %c0_31 = arith.constant 0 : index
    %78 = vector.load %arg2[%c4, %c0_31] : memref<18x128xf32, #tpu.memory_space<vmem>>, vector<1x64xf32>
    %79 = vector.broadcast %78 : vector<1x64xf32> to vector<16x64xf32>
    %80 = arith.addf %77, %79 : vector<16x64xf32>
    %cst_32 = arith.constant 0.000000e+00 : f32
    %81 = vector.broadcast %cst_32 : f32 to vector<16x64xf32>
    %82 = arith.maximumf %80, %81 : vector<16x64xf32>
    %c144 = arith.constant 144 : index
    %c0_33 = arith.constant 0 : index
    %83 = vector.load %arg1[%c144, %c0_33] : memref<368x128xf32, #tpu.memory_space<vmem>>, vector<64x32xf32>
    %cst_34 = arith.constant dense<0.000000e+00> : vector<16x32xf32>
    %84 = tpu.matmul %82, %83, %cst_34 {dimension_numbers = #tpu.dot_dimension_numbers<[1], [0], [0], [1], [0, 0, 1, 1], [], []>} : vector<16x64xf32>, vector<64x32xf32>, vector<16x32xf32> -> vector<16x32xf32>
    %c5 = arith.constant 5 : index
    %c0_35 = arith.constant 0 : index
    %85 = vector.load %arg2[%c5, %c0_35] : memref<18x128xf32, #tpu.memory_space<vmem>>, vector<1x32xf32>
    %86 = vector.broadcast %85 : vector<1x32xf32> to vector<16x32xf32>
    %87 = arith.addf %84, %86 : vector<16x32xf32>
    %88 = arith.addf %75, %87 : vector<16x32xf32>
    %c6 = arith.constant 6 : index
    %c0_36 = arith.constant 0 : index
    %89 = vector.load %arg2[%c6, %c0_36] : memref<18x128xf32, #tpu.memory_space<vmem>>, vector<1x32xf32>
    %c7 = arith.constant 7 : index
    %c0_37 = arith.constant 0 : index
    %90 = vector.load %arg2[%c7, %c0_37] : memref<18x128xf32, #tpu.memory_space<vmem>>, vector<1x32xf32>
    %cst_38 = arith.constant dense<0.000000e+00> : vector<16xf32>
    %91 = vector.multi_reduction <add>, %88, %cst_38 [1] : vector<16x32xf32> to vector<16xf32>
    %92 = vector.shape_cast %91 : vector<16xf32> to vector<16x1xf32>
    %cst_39 = arith.constant 3.200000e+01 : f32
    %93 = vector.broadcast %cst_39 : f32 to vector<16x1xf32>
    %94 = arith.divf %92, %93 : vector<16x1xf32>
    %95 = arith.mulf %88, %88 : vector<16x32xf32>
    %cst_40 = arith.constant dense<0.000000e+00> : vector<16xf32>
    %96 = vector.multi_reduction <add>, %95, %cst_40 [1] : vector<16x32xf32> to vector<16xf32>
    %97 = vector.shape_cast %96 : vector<16xf32> to vector<16x1xf32>
    %cst_41 = arith.constant 3.200000e+01 : f32
    %98 = vector.broadcast %cst_41 : f32 to vector<16x1xf32>
    %99 = arith.divf %97, %98 : vector<16x1xf32>
    %100 = arith.mulf %94, %94 : vector<16x1xf32>
    %101 = arith.subf %99, %100 : vector<16x1xf32>
    %102 = vector.broadcast %94 : vector<16x1xf32> to vector<16x32xf32>
    %103 = arith.subf %88, %102 : vector<16x32xf32>
    %cst_42 = arith.constant 9.99999974E-6 : f32
    %104 = vector.broadcast %cst_42 : f32 to vector<16x1xf32>
    %105 = arith.addf %101, %104 : vector<16x1xf32>
    %106 = math.rsqrt %105 : vector<16x1xf32>
    %107 = vector.broadcast %106 : vector<16x1xf32> to vector<16x32xf32>
    %108 = arith.mulf %103, %107 : vector<16x32xf32>
    %109 = vector.broadcast %89 : vector<1x32xf32> to vector<16x32xf32>
    %110 = arith.mulf %108, %109 : vector<16x32xf32>
    %111 = vector.broadcast %90 : vector<1x32xf32> to vector<16x32xf32>
    %112 = arith.addf %110, %111 : vector<16x32xf32>
    %c208 = arith.constant 208 : index
    %c0_43 = arith.constant 0 : index
    %113 = vector.load %arg1[%c208, %c0_43] : memref<368x128xf32, #tpu.memory_space<vmem>>, vector<32x96xf32>
    %cst_44 = arith.constant dense<0.000000e+00> : vector<16x96xf32>
    %114 = tpu.matmul %112, %113, %cst_44 {dimension_numbers = #tpu.dot_dimension_numbers<[1], [0], [0], [1], [0, 0, 1, 1], [], []>} : vector<16x32xf32>, vector<32x96xf32>, vector<16x96xf32> -> vector<16x96xf32>
    %c8 = arith.constant 8 : index
    %c0_45 = arith.constant 0 : index
    %115 = vector.load %arg2[%c8, %c0_45] : memref<18x128xf32, #tpu.memory_space<vmem>>, vector<1x96xf32>
    %116 = vector.broadcast %115 : vector<1x96xf32> to vector<16x96xf32>
    %117 = arith.addf %114, %116 : vector<16x96xf32>
    %118 = vector.extract_strided_slice %117 {offsets = [0, 0], sizes = [16, 16], strides = [1, 1]} : vector<16x96xf32> to vector<16x16xf32>
    %119 = vector.extract_strided_slice %117 {offsets = [0, 32], sizes = [16, 16], strides = [1, 1]} : vector<16x96xf32> to vector<16x16xf32>
    %120 = vector.extract_strided_slice %117 {offsets = [0, 64], sizes = [16, 16], strides = [1, 1]} : vector<16x96xf32> to vector<16x16xf32>
    %cst_46 = arith.constant dense<0.000000e+00> : vector<16x16xf32>
    %121 = tpu.matmul %118, %119, %cst_46 {dimension_numbers = #tpu.dot_dimension_numbers<[1], [1], [0], [0], [0, 0, 1, 0], [], []>} : vector<16x16xf32>, vector<16x16xf32>, vector<16x16xf32> -> vector<16x16xf32>
    %122 = arith.addf %121, %0 : vector<16x16xf32>
    %cst_47 = arith.constant dense<0xFF800000> : vector<16xf32>
    %123 = vector.multi_reduction <maximumf>, %122, %cst_47 [1] : vector<16x16xf32> to vector<16xf32>
    %124 = vector.shape_cast %123 : vector<16xf32> to vector<16x1xf32>
    %125 = vector.broadcast %124 : vector<16x1xf32> to vector<16x16xf32>
    %126 = arith.subf %122, %125 : vector<16x16xf32>
    %127 = math.exp %126 : vector<16x16xf32>
    %cst_48 = arith.constant dense<0.000000e+00> : vector<16xf32>
    %128 = vector.multi_reduction <add>, %127, %cst_48 [1] : vector<16x16xf32> to vector<16xf32>
    %129 = vector.shape_cast %128 : vector<16xf32> to vector<16x1xf32>
    %130 = tpu.reciprocal %129 {approx = true} : vector<16x1xf32> -> vector<16x1xf32>
    %131 = vector.broadcast %130 : vector<16x1xf32> to vector<16x16xf32>
    %132 = arith.mulf %127, %131 : vector<16x16xf32>
    %cst_49 = arith.constant dense<0.000000e+00> : vector<16x16xf32>
    %133 = tpu.matmul %132, %120, %cst_49 {dimension_numbers = #tpu.dot_dimension_numbers<[1], [0], [0], [1], [0, 0, 1, 1], [], []>} : vector<16x16xf32>, vector<16x16xf32>, vector<16x16xf32> -> vector<16x16xf32>
    %c240 = arith.constant 240 : index
    %c0_50 = arith.constant 0 : index
    %134 = vector.load %arg1[%c240, %c0_50] : memref<368x128xf32, #tpu.memory_space<vmem>>, vector<16x32xf32>
    %cst_51 = arith.constant dense<0.000000e+00> : vector<16x32xf32>
    %135 = tpu.matmul %133, %134, %cst_51 {dimension_numbers = #tpu.dot_dimension_numbers<[1], [0], [0], [1], [0, 0, 1, 1], [], []>} : vector<16x16xf32>, vector<16x32xf32>, vector<16x32xf32> -> vector<16x32xf32>
    %136 = vector.extract_strided_slice %117 {offsets = [0, 16], sizes = [16, 16], strides = [1, 1]} : vector<16x96xf32> to vector<16x16xf32>
    %137 = vector.extract_strided_slice %117 {offsets = [0, 48], sizes = [16, 16], strides = [1, 1]} : vector<16x96xf32> to vector<16x16xf32>
    %138 = vector.extract_strided_slice %117 {offsets = [0, 80], sizes = [16, 16], strides = [1, 1]} : vector<16x96xf32> to vector<16x16xf32>
    %cst_52 = arith.constant dense<0.000000e+00> : vector<16x16xf32>
    %139 = tpu.matmul %136, %137, %cst_52 {dimension_numbers = #tpu.dot_dimension_numbers<[1], [1], [0], [0], [0, 0, 1, 0], [], []>} : vector<16x16xf32>, vector<16x16xf32>, vector<16x16xf32> -> vector<16x16xf32>
    %140 = arith.addf %139, %0 : vector<16x16xf32>
    %cst_53 = arith.constant dense<0xFF800000> : vector<16xf32>
    %141 = vector.multi_reduction <maximumf>, %140, %cst_53 [1] : vector<16x16xf32> to vector<16xf32>
    %142 = vector.shape_cast %141 : vector<16xf32> to vector<16x1xf32>
    %143 = vector.broadcast %142 : vector<16x1xf32> to vector<16x16xf32>
    %144 = arith.subf %140, %143 : vector<16x16xf32>
    %145 = math.exp %144 : vector<16x16xf32>
    %cst_54 = arith.constant dense<0.000000e+00> : vector<16xf32>
    %146 = vector.multi_reduction <add>, %145, %cst_54 [1] : vector<16x16xf32> to vector<16xf32>
    %147 = vector.shape_cast %146 : vector<16xf32> to vector<16x1xf32>
    %148 = tpu.reciprocal %147 {approx = true} : vector<16x1xf32> -> vector<16x1xf32>
    %149 = vector.broadcast %148 : vector<16x1xf32> to vector<16x16xf32>
    %150 = arith.mulf %145, %149 : vector<16x16xf32>
    %cst_55 = arith.constant dense<0.000000e+00> : vector<16x16xf32>
    %151 = tpu.matmul %150, %138, %cst_55 {dimension_numbers = #tpu.dot_dimension_numbers<[1], [0], [0], [1], [0, 0, 1, 1], [], []>} : vector<16x16xf32>, vector<16x16xf32>, vector<16x16xf32> -> vector<16x16xf32>
    %c256 = arith.constant 256 : index
    %c0_56 = arith.constant 0 : index
    %152 = vector.load %arg1[%c256, %c0_56] : memref<368x128xf32, #tpu.memory_space<vmem>>, vector<16x32xf32>
    %cst_57 = arith.constant dense<0.000000e+00> : vector<16x32xf32>
    %153 = tpu.matmul %151, %152, %cst_57 {dimension_numbers = #tpu.dot_dimension_numbers<[1], [0], [0], [1], [0, 0, 1, 1], [], []>} : vector<16x16xf32>, vector<16x32xf32>, vector<16x32xf32> -> vector<16x32xf32>
    %154 = arith.addf %135, %153 : vector<16x32xf32>
    %c9 = arith.constant 9 : index
    %c0_58 = arith.constant 0 : index
    %155 = vector.load %arg2[%c9, %c0_58] : memref<18x128xf32, #tpu.memory_space<vmem>>, vector<1x32xf32>
    %156 = vector.broadcast %155 : vector<1x32xf32> to vector<16x32xf32>
    %157 = arith.addf %154, %156 : vector<16x32xf32>
    %158 = arith.addf %112, %157 : vector<16x32xf32>
    %c10 = arith.constant 10 : index
    %c0_59 = arith.constant 0 : index
    %159 = vector.load %arg2[%c10, %c0_59] : memref<18x128xf32, #tpu.memory_space<vmem>>, vector<1x32xf32>
    %c11 = arith.constant 11 : index
    %c0_60 = arith.constant 0 : index
    %160 = vector.load %arg2[%c11, %c0_60] : memref<18x128xf32, #tpu.memory_space<vmem>>, vector<1x32xf32>
    %cst_61 = arith.constant dense<0.000000e+00> : vector<16xf32>
    %161 = vector.multi_reduction <add>, %158, %cst_61 [1] : vector<16x32xf32> to vector<16xf32>
    %162 = vector.shape_cast %161 : vector<16xf32> to vector<16x1xf32>
    %cst_62 = arith.constant 3.200000e+01 : f32
    %163 = vector.broadcast %cst_62 : f32 to vector<16x1xf32>
    %164 = arith.divf %162, %163 : vector<16x1xf32>
    %165 = arith.mulf %158, %158 : vector<16x32xf32>
    %cst_63 = arith.constant dense<0.000000e+00> : vector<16xf32>
    %166 = vector.multi_reduction <add>, %165, %cst_63 [1] : vector<16x32xf32> to vector<16xf32>
    %167 = vector.shape_cast %166 : vector<16xf32> to vector<16x1xf32>
    %cst_64 = arith.constant 3.200000e+01 : f32
    %168 = vector.broadcast %cst_64 : f32 to vector<16x1xf32>
    %169 = arith.divf %167, %168 : vector<16x1xf32>
    %170 = arith.mulf %164, %164 : vector<16x1xf32>
    %171 = arith.subf %169, %170 : vector<16x1xf32>
    %172 = vector.broadcast %164 : vector<16x1xf32> to vector<16x32xf32>
    %173 = arith.subf %158, %172 : vector<16x32xf32>
    %cst_65 = arith.constant 9.99999974E-6 : f32
    %174 = vector.broadcast %cst_65 : f32 to vector<16x1xf32>
    %175 = arith.addf %171, %174 : vector<16x1xf32>
    %176 = math.rsqrt %175 : vector<16x1xf32>
    %177 = vector.broadcast %176 : vector<16x1xf32> to vector<16x32xf32>
    %178 = arith.mulf %173, %177 : vector<16x32xf32>
    %179 = vector.broadcast %159 : vector<1x32xf32> to vector<16x32xf32>
    %180 = arith.mulf %178, %179 : vector<16x32xf32>
    %181 = vector.broadcast %160 : vector<1x32xf32> to vector<16x32xf32>
    %182 = arith.addf %180, %181 : vector<16x32xf32>
    %c272 = arith.constant 272 : index
    %c0_66 = arith.constant 0 : index
    %183 = vector.load %arg1[%c272, %c0_66] : memref<368x128xf32, #tpu.memory_space<vmem>>, vector<32x64xf32>
    %cst_67 = arith.constant dense<0.000000e+00> : vector<16x64xf32>
    %184 = tpu.matmul %182, %183, %cst_67 {dimension_numbers = #tpu.dot_dimension_numbers<[1], [0], [0], [1], [0, 0, 1, 1], [], []>} : vector<16x32xf32>, vector<32x64xf32>, vector<16x64xf32> -> vector<16x64xf32>
    %c12 = arith.constant 12 : index
    %c0_68 = arith.constant 0 : index
    %185 = vector.load %arg2[%c12, %c0_68] : memref<18x128xf32, #tpu.memory_space<vmem>>, vector<1x64xf32>
    %186 = vector.broadcast %185 : vector<1x64xf32> to vector<16x64xf32>
    %187 = arith.addf %184, %186 : vector<16x64xf32>
    %cst_69 = arith.constant 0.000000e+00 : f32
    %188 = vector.broadcast %cst_69 : f32 to vector<16x64xf32>
    %189 = arith.maximumf %187, %188 : vector<16x64xf32>
    %c304 = arith.constant 304 : index
    %c0_70 = arith.constant 0 : index
    %190 = vector.load %arg1[%c304, %c0_70] : memref<368x128xf32, #tpu.memory_space<vmem>>, vector<64x32xf32>
    %cst_71 = arith.constant dense<0.000000e+00> : vector<16x32xf32>
    %191 = tpu.matmul %189, %190, %cst_71 {dimension_numbers = #tpu.dot_dimension_numbers<[1], [0], [0], [1], [0, 0, 1, 1], [], []>} : vector<16x64xf32>, vector<64x32xf32>, vector<16x32xf32> -> vector<16x32xf32>
    %c13 = arith.constant 13 : index
    %c0_72 = arith.constant 0 : index
    %192 = vector.load %arg2[%c13, %c0_72] : memref<18x128xf32, #tpu.memory_space<vmem>>, vector<1x32xf32>
    %193 = vector.broadcast %192 : vector<1x32xf32> to vector<16x32xf32>
    %194 = arith.addf %191, %193 : vector<16x32xf32>
    %195 = arith.addf %182, %194 : vector<16x32xf32>
    %c14 = arith.constant 14 : index
    %c0_73 = arith.constant 0 : index
    %196 = vector.load %arg2[%c14, %c0_73] : memref<18x128xf32, #tpu.memory_space<vmem>>, vector<1x32xf32>
    %c15 = arith.constant 15 : index
    %c0_74 = arith.constant 0 : index
    %197 = vector.load %arg2[%c15, %c0_74] : memref<18x128xf32, #tpu.memory_space<vmem>>, vector<1x32xf32>
    %cst_75 = arith.constant dense<0.000000e+00> : vector<16xf32>
    %198 = vector.multi_reduction <add>, %195, %cst_75 [1] : vector<16x32xf32> to vector<16xf32>
    %199 = vector.shape_cast %198 : vector<16xf32> to vector<16x1xf32>
    %cst_76 = arith.constant 3.200000e+01 : f32
    %200 = vector.broadcast %cst_76 : f32 to vector<16x1xf32>
    %201 = arith.divf %199, %200 : vector<16x1xf32>
    %202 = arith.mulf %195, %195 : vector<16x32xf32>
    %cst_77 = arith.constant dense<0.000000e+00> : vector<16xf32>
    %203 = vector.multi_reduction <add>, %202, %cst_77 [1] : vector<16x32xf32> to vector<16xf32>
    %204 = vector.shape_cast %203 : vector<16xf32> to vector<16x1xf32>
    %cst_78 = arith.constant 3.200000e+01 : f32
    %205 = vector.broadcast %cst_78 : f32 to vector<16x1xf32>
    %206 = arith.divf %204, %205 : vector<16x1xf32>
    %207 = arith.mulf %201, %201 : vector<16x1xf32>
    %208 = arith.subf %206, %207 : vector<16x1xf32>
    %209 = vector.broadcast %201 : vector<16x1xf32> to vector<16x32xf32>
    %210 = arith.subf %195, %209 : vector<16x32xf32>
    %cst_79 = arith.constant 9.99999974E-6 : f32
    %211 = vector.broadcast %cst_79 : f32 to vector<16x1xf32>
    %212 = arith.addf %208, %211 : vector<16x1xf32>
    %213 = math.rsqrt %212 : vector<16x1xf32>
    %214 = vector.broadcast %213 : vector<16x1xf32> to vector<16x32xf32>
    %215 = arith.mulf %210, %214 : vector<16x32xf32>
    %216 = vector.broadcast %196 : vector<1x32xf32> to vector<16x32xf32>
    %217 = arith.mulf %215, %216 : vector<16x32xf32>
    %218 = vector.broadcast %197 : vector<1x32xf32> to vector<16x32xf32>
    %219 = arith.addf %217, %218 : vector<16x32xf32>
    %c16_80 = arith.constant 16 : index
    %c0_81 = arith.constant 0 : index
    %220 = vector.load %arg2[%c16_80, %c0_81] : memref<18x128xf32, #tpu.memory_space<vmem>>, vector<1x32xf32>
    %c17 = arith.constant 17 : index
    %c0_82 = arith.constant 0 : index
    %221 = vector.load %arg2[%c17, %c0_82] : memref<18x128xf32, #tpu.memory_space<vmem>>, vector<1x32xf32>
    %cst_83 = arith.constant dense<0.000000e+00> : vector<16xf32>
    %222 = vector.multi_reduction <add>, %219, %cst_83 [1] : vector<16x32xf32> to vector<16xf32>
    %223 = vector.shape_cast %222 : vector<16xf32> to vector<16x1xf32>
    %cst_84 = arith.constant 3.200000e+01 : f32
    %224 = vector.broadcast %cst_84 : f32 to vector<16x1xf32>
    %225 = arith.divf %223, %224 : vector<16x1xf32>
    %226 = arith.mulf %219, %219 : vector<16x32xf32>
    %cst_85 = arith.constant dense<0.000000e+00> : vector<16xf32>
    %227 = vector.multi_reduction <add>, %226, %cst_85 [1] : vector<16x32xf32> to vector<16xf32>
    %228 = vector.shape_cast %227 : vector<16xf32> to vector<16x1xf32>
    %cst_86 = arith.constant 3.200000e+01 : f32
    %229 = vector.broadcast %cst_86 : f32 to vector<16x1xf32>
    %230 = arith.divf %228, %229 : vector<16x1xf32>
    %231 = arith.mulf %225, %225 : vector<16x1xf32>
    %232 = arith.subf %230, %231 : vector<16x1xf32>
    %233 = vector.broadcast %225 : vector<16x1xf32> to vector<16x32xf32>
    %234 = arith.subf %219, %233 : vector<16x32xf32>
    %cst_87 = arith.constant 9.99999974E-6 : f32
    %235 = vector.broadcast %cst_87 : f32 to vector<16x1xf32>
    %236 = arith.addf %232, %235 : vector<16x1xf32>
    %237 = math.rsqrt %236 : vector<16x1xf32>
    %238 = vector.broadcast %237 : vector<16x1xf32> to vector<16x32xf32>
    %239 = arith.mulf %234, %238 : vector<16x32xf32>
    %240 = vector.broadcast %220 : vector<1x32xf32> to vector<16x32xf32>
    %241 = arith.mulf %239, %240 : vector<16x32xf32>
    %242 = vector.broadcast %221 : vector<1x32xf32> to vector<16x32xf32>
    %243 = arith.addf %241, %242 : vector<16x32xf32>
    %244 = vector.extract_strided_slice %243 {offsets = [0, 0], sizes = [8, 32], strides = [1, 1]} : vector<16x32xf32> to vector<8x32xf32>
    %cst_88 = arith.constant dense<0xFF800000> : vector<32xf32>
    %245 = vector.multi_reduction <maximumf>, %244, %cst_88 [0] : vector<8x32xf32> to vector<32xf32>
    %246 = vector.shape_cast %245 : vector<32xf32> to vector<1x32xf32>
    %c0_89 = arith.constant 0 : index
    %c0_90 = arith.constant 0 : index
    %247 = vector.load %arg3[%c0_89, %c0_90] : memref<2x32xf32, #tpu.memory_space<vmem>>, vector<1x32xf32>
    tpu.vector_store %arg3[%c0_89, %c0_90], %246 {strides = array<i32>} : memref<2x32xf32, #tpu.memory_space<vmem>>, vector<1x32xf32>,
    %248 = vector.extract_strided_slice %243 {offsets = [8, 0], sizes = [8, 32], strides = [1, 1]} : vector<16x32xf32> to vector<8x32xf32>
    %cst_91 = arith.constant dense<0xFF800000> : vector<32xf32>
    %249 = vector.multi_reduction <maximumf>, %248, %cst_91 [0] : vector<8x32xf32> to vector<32xf32>
    %250 = vector.shape_cast %249 : vector<32xf32> to vector<1x32xf32>
    %c1_92 = arith.constant 1 : index
    %c0_93 = arith.constant 0 : index
    %251 = vector.load %arg3[%c1_92, %c0_93] : memref<2x32xf32, #tpu.memory_space<vmem>>, vector<1x32xf32>
    tpu.vector_store %arg3[%c1_92, %c0_93], %250 {strides = array<i32>} : memref<2x32xf32, #tpu.memory_space<vmem>>, vector<1x32xf32>,
    return
  }
}

</mosaic_0001>

<llo_original>
// kernel: vit_extractor.1
$region0: #{vit_extractor.1}
  #allocation0 [shape = 'u32[]', space=smem, size = 0x4, offset = 0x4, fixed_abs, tag = 'smem constant byte address 0x4 - core index']
  #allocation1 [shape = 'u32[144,128]{1,0:T(1,128)}', space=vmem, size = 0x12000, scoped, tag = 'internal scratch']
  %s0 = inlined_call_operand.vmem [shape: f32[16,16], index: 0, kind: input, shape index: {}]
  %s1 = inlined_call_operand.vmem [shape: f32[368,128], index: 1, kind: input, shape index: {}]
  %s2 = inlined_call_operand.vmem [shape: f32[18,128], index: 2, kind: input, shape index: {}]
  %s3 = inlined_call_operand.hbm [shape: f32[2,32], index: 3, kind: output, shape index: {}]
  %s4 = sld [smem:[#allocation0]]
  $region22: #{vit_extractor.1} parent=0
    _
  %s6 = ssub.s32 1, %s4
  %s7 = scalar_select 0, %s6, %s4
  $region1: #{vit_extractor.1} parent=0
    #allocation2 [shape = 'u8[1024]{0}', space=vmem, size = 0x400, scoped, tag = 'output window, operand 0, single buffered']
    #allocation3 [shape = 's32[1]{0}', space=sflag, size = 0x4, scoped, tag = 'scoped memory for vit_extractor.1']
    %8 = vsyncpa [#allocation3], 0
    // Predicated region
    $region2: #{vit_extractor.1} parent=1 // pred_check
      _
    $region3: #{vit_extractor.1} parent=1 // pred_check_branch
      %10 = sbr.rel (0) target = $region5
    $region4: #{vit_extractor.1} parent=1 // pred_region
      _
    $region5: #{vit_extractor.1} parent=1 // pred_fallthru
      _
    // Predicated region
    $region6: #{vit_extractor.1} parent=1 // pred_check
      _
    $region7: #{vit_extractor.1} parent=1 // pred_check_branch
      %12 = sbr.rel (0) target = $region9
    $region8: #{vit_extractor.1} parent=1 // pred_region
      _
    $region9: #{vit_extractor.1} parent=1 // pred_fallthru
      _
    // Predicated region
    $region10: #{vit_extractor.1} parent=1 // pred_check
      _
    $region11: #{vit_extractor.1} parent=1 // pred_check_branch
      %14 = sbr.rel (0) target = $region13
    $region12: #{vit_extractor.1} parent=1 // pred_region
      _
    $region13: #{vit_extractor.1} parent=1 // pred_fallthru
      _
    %v15 = vld [vmem:[%s1 + $0x20] sm:$0xff]
    %v16 = vld [vmem:[%s1 + $0x28] sm:$0xff]
    %v17 = vld [vmem:[%s0] sm:$0xff]
    %v18 = vld [vmem:[%s0 + $0x8] sm:$0xff]
    %v19 = vld [vmem:[%s1] sm:$0xff]
    %v20 = vld [vmem:[%s1 + $0x8] sm:$0xff]
    %v21 = vld [vmem:[%s1 + $0x10] sm:$0xff]
    %v22 = vld [vmem:[%s1 + $0x18] sm:$0xff]
    %vm23 = vcmask 130048
    %v25 = vsel %vm23, %v17, 0
    %v28 = vsel %vm23, %v18, 0
    %30 = vmatprep.subr.mxu0 0.0
    %31 = vmatpush1.msra.mxu0 0.0
    %32 = vmatprep.subr.mxu0 0.0
    %33 = vmatpush1.msra.mxu0 0.0
    %34 = vmatprep.subr.mxu0 0.0
    %35 = vmatpush1.msra.mxu0 0.0
    %36 = vmatprep.subr.mxu0 0.0
    %37 = vmatpush1.msra.mxu0 0.0
    %38 = vmatprep.subr.mxu0 0.0
    %39 = vmatpush1.msra.mxu0 0.0
    %40 = vmatprep.subr.mxu0 0.0
    %41 = vmatpush1.msra.mxu0 0.0
    %42 = vmatprep.subr.mxu0 0.0
    %43 = vmatpush1.msra.mxu0 0.0
    %44 = vmatprep.subr.mxu0 0.0
    %45 = vmatpush1.msra.mxu0 0.0
    %46 = vmatprep.subr.mxu0 0.0
    %47 = vmatpush1.msra.mxu0 0.0
    %48 = vmatprep.subr.mxu0 0.0
    %49 = vmatpush1.msra.mxu0 0.0
    %50 = vmatprep.subr.mxu0 0.0
    %51 = vmatpush1.msra.mxu0 0.0
    %52 = vmatprep.subr.mxu0 0.0
    %53 = vmatpush1.msra.mxu0 0.0
    %54 = vmatprep.subr.mxu0 0.0
    %55 = vmatpush1.msra.mxu0 0.0
    %56 = vmatprep.subr.mxu0 0.0
    %57 = vmatpush1.msra.mxu0 0.0
    %58 = vmatprep.subr.mxu0 0.0
    %59 = vmatpush1.msra.mxu0 %v20
    %60 = vmatprep.subr.mxu0 0.0
    %61 = vmatpush1.msra.mxu0 %v19
    %62 = vmatprep.subr.mxu0 0.0
    %63 = vmatpush2.msra.mxu0 0.0
    %64 = vmatprep.subr.mxu0 0.0
    %65 = vmatpush2.msra.mxu0 0.0
    %66 = vmatprep.subr.mxu0 0.0
    %67 = vmatpush2.msra.mxu0 0.0
    %68 = vmatprep.subr.mxu0 0.0
    %69 = vmatpush2.msra.mxu0 0.0
    %70 = vmatprep.subr.mxu0 0.0
    %71 = vmatpush2.msra.mxu0 0.0
    %72 = vmatprep.subr.mxu0 0.0
    %73 = vmatpush2.msra.mxu0 0.0
    %74 = vmatprep.subr.mxu0 0.0
    %75 = vmatpush2.msra.mxu0 0.0
    %76 = vmatprep.subr.mxu0 0.0
    %77 = vmatpush2.msra.mxu0 0.0
    %78 = vmatprep.subr.mxu0 0.0
    %79 = vmatpush2.msra.mxu0 0.0
    %80 = vmatprep.subr.mxu0 0.0
    %81 = vmatpush2.msra.mxu0 0.0
    %82 = vmatprep.subr.mxu0 0.0
    %83 = vmatpush2.msra.mxu0 0.0
    %84 = vmatprep.subr.mxu0 0.0
    %85 = vmatpush2.msra.mxu0 0.0
    %86 = vmatprep.subr.mxu0 0.0
    %87 = vmatpush2.msra.mxu0 0.0
    %88 = vmatprep.subr.mxu0 0.0
    %89 = vmatpush2.msra.mxu0 0.0
    %90 = vmatprep.subr.mxu0 0.0
    %91 = vmatpush2.msra.mxu0 0.0
    %92 = vmatprep.subr.mxu0 0.0
    %93 = vmatpush2.msra.mxu0 0.0
    %94 = vmatprep.mubr.f32.mxu0 0.0
    %95 = vmatmul.mubr.f32.gmra.mxu0 %v25
    %v96 = vpop.f32.mrf.mxu0
    %v97 = vadd.f32 %v21, %v96
    %v98 = vpop.f32.mrf.mxu0
    %99 = vmatprep.mubr.f32.mxu0 0.0
    %100 = vmatmul.mubr.f32.gmra.mxu0 %v28
    %v101 = vpop.f32.mrf.mxu0
    %v102 = vadd.f32 %v22, %v101
    %v103 = vpop.f32.mrf.mxu0
    %104 = vdwg.mxu0
    %v105 = vld [vmem:[%s1 + $0x30] sm:$0xff]
    %v106 = vld [vmem:[%s1 + $0x38] sm:$0xff]
    %v107 = vld [vmem:[%s1 + $0x40] sm:$0xff]
    %v108 = vld [vmem:[%s1 + $0x48] sm:$0xff]
    %v109 = vld [vmem:[%s2] sm:$0x1]
    %v110 = vlaneseq
    %v111 = vshrl.u32 %v110, 7
    %v112 = vsub.s32 0, %v111
    %v113 = vrot.slane %v109, %v112
    %vm114 = vcmask 261120
    %v116 = vsel %vm114, %v97, 0
    %v119 = vsel %vm114, %v102, 0
    %121 = vmatprep.subr.mxu0 0.0
    %122 = vmatpush1.msra.mxu0 0.0
    %123 = vmatprep.subr.mxu0 0.0
    %124 = vmatpush1.msra.mxu0 0.0
    %125 = vmatprep.subr.mxu0 0.0
    %126 = vmatpush1.msra.mxu0 0.0
    %127 = vmatprep.subr.mxu0 0.0
    %128 = vmatpush1.msra.mxu0 0.0
    %129 = vmatprep.subr.mxu0 0.0
    %130 = vmatpush1.msra.mxu0 0.0
    %131 = vmatprep.subr.mxu0 0.0
    %132 = vmatpush1.msra.mxu0 0.0
    %133 = vmatprep.subr.mxu0 0.0
    %134 = vmatpush1.msra.mxu0 0.0
    %135 = vmatprep.subr.mxu0 0.0
    %136 = vmatpush1.msra.mxu0 0.0
    %137 = vmatprep.subr.mxu0 0.0
    %138 = vmatpush1.msra.mxu0 0.0
    %139 = vmatprep.subr.mxu0 0.0
    %140 = vmatpush1.msra.mxu0 0.0
    %141 = vmatprep.subr.mxu0 0.0
    %142 = vmatpush1.msra.mxu0 0.0
    %143 = vmatprep.subr.mxu0 0.0
    %144 = vmatpush1.msra.mxu0 0.0
    %145 = vmatprep.subr.mxu0 0.0
    %146 = vmatpush1.msra.mxu0 %v108
    %147 = vmatprep.subr.mxu0 0.0
    %148 = vmatpush1.msra.mxu0 %v107
    %149 = vmatprep.subr.mxu0 0.0
    %150 = vmatpush1.msra.mxu0 %v106
    %151 = vmatprep.subr.mxu0 0.0
    %152 = vmatpush1.msra.mxu0 %v105
    %153 = vmatprep.subr.mxu0 0.0
    %154 = vmatpush2.msra.mxu0 0.0
    %155 = vmatprep.subr.mxu0 0.0
    %156 = vmatpush2.msra.mxu0 0.0
    %157 = vmatprep.subr.mxu0 0.0
    %158 = vmatpush2.msra.mxu0 0.0
    %159 = vmatprep.subr.mxu0 0.0
    %160 = vmatpush2.msra.mxu0 0.0
    %161 = vmatprep.subr.mxu0 0.0
    %162 = vmatpush2.msra.mxu0 0.0
    %163 = vmatprep.subr.mxu0 0.0
    %164 = vmatpush2.msra.mxu0 0.0
    %165 = vmatprep.subr.mxu0 0.0
    %166 = vmatpush2.msra.mxu0 0.0
    %167 = vmatprep.subr.mxu0 0.0
    %168 = vmatpush2.msra.mxu0 0.0
    %169 = vmatprep.subr.mxu0 0.0
    %170 = vmatpush2.msra.mxu0 0.0
    %171 = vmatprep.subr.mxu0 0.0
    %172 = vmatpush2.msra.mxu0 0.0
    %173 = vmatprep.subr.mxu0 0.0
    %174 = vmatpush2.msra.mxu0 0.0
    %175 = vmatprep.subr.mxu0 0.0
    %176 = vmatpush2.msra.mxu0 0.0
    %177 = vmatprep.subr.mxu0 0.0
    %178 = vmatpush2.msra.mxu0 0.0
    %179 = vmatprep.subr.mxu0 0.0
    %180 = vmatpush2.msra.mxu0 0.0
    %181 = vmatprep.subr.mxu0 0.0
    %182 = vmatpush2.msra.mxu0 0.0
    %183 = vmatprep.subr.mxu0 0.0
    %184 = vmatpush2.msra.mxu0 0.0
    %185 = vmatprep.mubr.f32.mxu0 0.0
    %186 = vmatmul.mubr.f32.gmra.mxu0 %v116
    %v187 = vpop.f32.mrf.mxu0
    %v188 = vadd.f32 %v113, %v187
    %v189 = vpop.f32.mrf.mxu0
    %190 = vmatprep.mubr.f32.mxu0 0.0
    %191 = vmatmul.mubr.f32.gmra.mxu0 %v119
    %v192 = vpop.f32.mrf.mxu0
    %v193 = vadd.f32 %v113, %v192
    %v194 = vpop.f32.mrf.mxu0
    %195 = vdwg.mxu0
    %198 = vrot.lane.b32.xlu0 %v188, 96
    %v199 = vpop.permute.xlu0 %198
    %200 = vrot.lane.b32.xlu0 %v193, 96
    %v201 = vpop.permute.xlu0 %200
    %v202 = vsel %vm23, %v188, 0
    %v204 = vsel %vm23, %v193, 0
    %v206 = vsel %vm23, %v199, 0
    %v208 = vsel %vm23, %v201, 0
    %210 = vmatprep.subr.mxu0 0.0
    %211 = vmatpush1.xpose.msra.mxu0 0.0
    %212 = vmatprep.subr.mxu0 0.0
    %213 = vmatpush1.xpose.msra.mxu0 0.0
    %214 = vmatprep.subr.mxu0 0.0
    %215 = vmatpush1.xpose.msra.mxu0 0.0
    %216 = vmatprep.subr.mxu0 0.0
    %217 = vmatpush1.xpose.msra.mxu0 0.0
    %218 = vmatprep.subr.mxu0 0.0
    %219 = vmatpush1.xpose.msra.mxu0 0.0
    %220 = vmatprep.subr.mxu0 0.0
    %221 = vmatpush1.xpose.msra.mxu0 0.0
    %222 = vmatprep.subr.mxu0 0.0
    %223 = vmatpush1.xpose.msra.mxu0 0.0
    %224 = vmatprep.subr.mxu0 0.0
    %225 = vmatpush1.xpose.msra.mxu0 0.0
    %226 = vmatprep.subr.mxu0 0.0
    %227 = vmatpush1.xpose.msra.mxu0 0.0
    %228 = vmatprep.subr.mxu0 0.0
    %229 = vmatpush1.xpose.msra.mxu0 0.0
    %230 = vmatprep.subr.mxu0 0.0
    %231 = vmatpush1.xpose.msra.mxu0 0.0
    %232 = vmatprep.subr.mxu0 0.0
    %233 = vmatpush1.xpose.msra.mxu0 0.0
    %234 = vmatprep.subr.mxu0 0.0
    %235 = vmatpush1.xpose.msra.mxu0 0.0
    %236 = vmatprep.subr.mxu0 0.0
    %237 = vmatpush1.xpose.msra.mxu0 0.0
    %238 = vmatprep.subr.mxu0 0.0
    %239 = vmatpush1.xpose.msra.mxu0 %v208
    %240 = vmatprep.subr.mxu0 0.0
    %241 = vmatpush1.xpose.msra.mxu0 %v206
    %242 = vmatprep.subr.mxu0 0.0
    %243 = vmatpush2.xpose.msra.mxu0 0.0
    %244 = vmatprep.subr.mxu0 0.0
    %245 = vmatpush2.xpose.msra.mxu0 0.0
    %246 = vmatprep.subr.mxu0 0.0
    %247 = vmatpush2.xpose.msra.mxu0 0.0
    %248 = vmatprep.subr.mxu0 0.0
    %249 = vmatpush2.xpose.msra.mxu0 0.0
    %250 = vmatprep.subr.mxu0 0.0
    %251 = vmatpush2.xpose.msra.mxu0 0.0
    %252 = vmatprep.subr.mxu0 0.0
    %253 = vmatpush2.xpose.msra.mxu0 0.0
    %254 = vmatprep.subr.mxu0 0.0
    %255 = vmatpush2.xpose.msra.mxu0 0.0
    %256 = vmatprep.subr.mxu0 0.0
    %257 = vmatpush2.xpose.msra.mxu0 0.0
    %258 = vmatprep.subr.mxu0 0.0
    %259 = vmatpush2.xpose.msra.mxu0 0.0
    %260 = vmatprep.subr.mxu0 0.0
    %261 = vmatpush2.xpose.msra.mxu0 0.0
    %262 = vmatprep.subr.mxu0 0.0
    %263 = vmatpush2.xpose.msra.mxu0 0.0
    %264 = vmatprep.subr.mxu0 0.0
    %265 = vmatpush2.xpose.msra.mxu0 0.0
    %266 = vmatprep.subr.mxu0 0.0
    %267 = vmatpush2.xpose.msra.mxu0 0.0
    %268 = vmatprep.subr.mxu0 0.0
    %269 = vmatpush2.xpose.msra.mxu0 0.0
    %270 = vmatprep.subr.mxu0 0.0
    %271 = vmatpush2.xpose.msra.mxu0 0.0
    %272 = vmatprep.subr.mxu0 0.0
    %273 = vmatpush2.xpose.msra.mxu0 0.0
    %274 = vmatprep.mubr.f32.mxu0 0.0
    %275 = vmatmul.mubr.f32.gmra.mxu0 %v202
    %v276 = vpop.f32.mrf.mxu0
    %v277 = vadd.f32 %v15, %v276
    %v278 = vpop.f32.mrf.mxu0
    %279 = vmatprep.mubr.f32.mxu0 0.0
    %280 = vmatmul.mubr.f32.gmra.mxu0 %v204
    %v281 = vpop.f32.mrf.mxu0
    %v282 = vadd.f32 %v16, %v281
    %v283 = vpop.f32.mrf.mxu0
    %284 = vdwg.mxu0
    %v285 = vsel %vm23, %v277, -inf
    %286 = vmax.xlane.f32.xlu0 %v285
    %v287 = vpop.xlane.xlu0 %286
    %v288 = vsel %vm23, %v282, -inf
    %289 = vmax.xlane.f32.xlu0 %v288
    %v290 = vpop.xlane.xlu0 %289
    %v291 = vsub.f32 %v277, %v287
    %v292 = vsub.f32 %v282, %v290
    %v293 = vmul.f32 %v291, 1.442695
    %v294 = vpow.pop %v293
    %v295 = vmul.f32 %v292, 1.442695
    %v296 = vpow.pop %v295
    %v297 = vsel %vm23, %v294, 0.0
    %298 = vadd.xlane.f32.xlu0 %v297
    %v299 = vpop.xlane.xlu0 %298
    %v300 = vsel %vm23, %v296, 0.0
    %301 = vadd.xlane.f32.xlu0 %v300
    %v302 = vpop.xlane.xlu0 %301
    %v303 = vrcp.pop %v299
    %v304 = vrcp.pop %v302
    %v305 = vmul.f32 %v294, %v303
    %v306 = vmul.f32 %v296, %v304
    %307 = vrot.lane.b32.xlu0 %v188, 64
    %v308 = vpop.permute.xlu0 %307
    %309 = vrot.lane.b32.xlu0 %v193, 64
    %v310 = vpop.permute.xlu0 %309
    %v314 = vsel %vm23, %v305, 0
    %v317 = vsel %vm23, %v306, 0
    %319 = vmatprep.subr.mxu0 0.0
    %320 = vmatpush1.msra.mxu0 0.0
    %321 = vmatprep.subr.mxu0 0.0
    %322 = vmatpush1.msra.mxu0 0.0
    %323 = vmatprep.subr.mxu0 0.0
    %324 = vmatpush1.msra.mxu0 0.0
    %325 = vmatprep.subr.mxu0 0.0
    %326 = vmatpush1.msra.mxu0 0.0
    %327 = vmatprep.subr.mxu0 0.0
    %328 = vmatpush1.msra.mxu0 0.0
    %329 = vmatprep.subr.mxu0 0.0
    %330 = vmatpush1.msra.mxu0 0.0
    %331 = vmatprep.subr.mxu0 0.0
    %332 = vmatpush1.msra.mxu0 0.0
    %333 = vmatprep.subr.mxu0 0.0
    %334 = vmatpush1.msra.mxu0 0.0
    %335 = vmatprep.subr.mxu0 0.0
    %336 = vmatpush1.msra.mxu0 0.0
    %337 = vmatprep.subr.mxu0 0.0
    %338 = vmatpush1.msra.mxu0 0.0
    %339 = vmatprep.subr.mxu0 0.0
    %340 = vmatpush1.msra.mxu0 0.0
    %341 = vmatprep.subr.mxu0 0.0
    %342 = vmatpush1.msra.mxu0 0.0
    %343 = vmatprep.subr.mxu0 0.0
    %344 = vmatpush1.msra.mxu0 0.0
    %345 = vmatprep.subr.mxu0 0.0
    %346 = vmatpush1.msra.mxu0 0.0
    %347 = vmatprep.subr.mxu0 0.0
    %348 = vmatpush1.msra.mxu0 %v310
    %349 = vmatprep.subr.mxu0 0.0
    %350 = vmatpush1.msra.mxu0 %v308
    %351 = vmatprep.subr.mxu0 0.0
    %352 = vmatpush2.msra.mxu0 0.0
    %353 = vmatprep.subr.mxu0 0.0
    %354 = vmatpush2.msra.mxu0 0.0
    %355 = vmatprep.subr.mxu0 0.0
    %356 = vmatpush2.msra.mxu0 0.0
    %357 = vmatprep.subr.mxu0 0.0
    %358 = vmatpush2.msra.mxu0 0.0
    %359 = vmatprep.subr.mxu0 0.0
    %360 = vmatpush2.msra.mxu0 0.0
    %361 = vmatprep.subr.mxu0 0.0
    %362 = vmatpush2.msra.mxu0 0.0
    %363 = vmatprep.subr.mxu0 0.0
    %364 = vmatpush2.msra.mxu0 0.0
    %365 = vmatprep.subr.mxu0 0.0
    %366 = vmatpush2.msra.mxu0 0.0
    %367 = vmatprep.subr.mxu0 0.0
    %368 = vmatpush2.msra.mxu0 0.0
    %369 = vmatprep.subr.mxu0 0.0
    %370 = vmatpush2.msra.mxu0 0.0
    %371 = vmatprep.subr.mxu0 0.0
    %372 = vmatpush2.msra.mxu0 0.0
    %373 = vmatprep.subr.mxu0 0.0
    %374 = vmatpush2.msra.mxu0 0.0
    %375 = vmatprep.subr.mxu0 0.0
    %376 = vmatpush2.msra.mxu0 0.0
    %377 = vmatprep.subr.mxu0 0.0
    %378 = vmatpush2.msra.mxu0 0.0
    %379 = vmatprep.subr.mxu0 0.0
    %380 = vmatpush2.msra.mxu0 0.0
    %381 = vmatprep.subr.mxu0 0.0
    %382 = vmatpush2.msra.mxu0 0.0
    %383 = vmatprep.mubr.f32.mxu0 0.0
    %384 = vmatmul.mubr.f32.gmra.mxu0 %v314
    %v385 = vpop.f32.mrf.mxu0
    %v386 = vadd.f32 0.0, %v385
    %v387 = vpop.f32.mrf.mxu0
    %388 = vmatprep.mubr.f32.mxu0 0.0
    %389 = vmatmul.mubr.f32.gmra.mxu0 %v317
    %v390 = vpop.f32.mrf.mxu0
    %v391 = vadd.f32 0.0, %v390
    %v392 = vpop.f32.mrf.mxu0
    %393 = vdwg.mxu0
    %v394 = vld [vmem:[%s1 + $0x50] sm:$0xff]
    %v395 = vld [vmem:[%s1 + $0x58] sm:$0xff]
    %396 = vrot.lane.b32.xlu0 %v188, 112
    %v397 = vpop.permute.xlu0 %396
    %398 = vrot.lane.b32.xlu0 %v193, 112
    %v399 = vpop.permute.xlu0 %398
    %400 = vrot.lane.b32.xlu0 %v188, 80
    %v401 = vpop.permute.xlu0 %400
    %402 = vrot.lane.b32.xlu0 %v193, 80
    %v403 = vpop.permute.xlu0 %402
    %v404 = vsel %vm23, %v397, 0
    %v406 = vsel %vm23, %v399, 0
    %v408 = vsel %vm23, %v401, 0
    %v410 = vsel %vm23, %v403, 0
    %412 = vmatprep.subr.mxu0 0.0
    %413 = vmatpush1.xpose.msra.mxu0 0.0
    %414 = vmatprep.subr.mxu0 0.0
    %415 = vmatpush1.xpose.msra.mxu0 0.0
    %416 = vmatprep.subr.mxu0 0.0
    %417 = vmatpush1.xpose.msra.mxu0 0.0
    %418 = vmatprep.subr.mxu0 0.0
    %419 = vmatpush1.xpose.msra.mxu0 0.0
    %420 = vmatprep.subr.mxu0 0.0
    %421 = vmatpush1.xpose.msra.mxu0 0.0
    %422 = vmatprep.subr.mxu0 0.0
    %423 = vmatpush1.xpose.msra.mxu0 0.0
    %424 = vmatprep.subr.mxu0 0.0
    %425 = vmatpush1.xpose.msra.mxu0 0.0
    %426 = vmatprep.subr.mxu0 0.0
    %427 = vmatpush1.xpose.msra.mxu0 0.0
    %428 = vmatprep.subr.mxu0 0.0
    %429 = vmatpush1.xpose.msra.mxu0 0.0
    %430 = vmatprep.subr.mxu0 0.0
    %431 = vmatpush1.xpose.msra.mxu0 0.0
    %432 = vmatprep.subr.mxu0 0.0
    %433 = vmatpush1.xpose.msra.mxu0 0.0
    %434 = vmatprep.subr.mxu0 0.0
    %435 = vmatpush1.xpose.msra.mxu0 0.0
    %436 = vmatprep.subr.mxu0 0.0
    %437 = vmatpush1.xpose.msra.mxu0 0.0
    %438 = vmatprep.subr.mxu0 0.0
    %439 = vmatpush1.xpose.msra.mxu0 0.0
    %440 = vmatprep.subr.mxu0 0.0
    %441 = vmatpush1.xpose.msra.mxu0 %v410
    %442 = vmatprep.subr.mxu0 0.0
    %443 = vmatpush1.xpose.msra.mxu0 %v408
    %444 = vmatprep.subr.mxu0 0.0
    %445 = vmatpush2.xpose.msra.mxu0 0.0
    %446 = vmatprep.subr.mxu0 0.0
    %447 = vmatpush2.xpose.msra.mxu0 0.0
    %448 = vmatprep.subr.mxu0 0.0
    %449 = vmatpush2.xpose.msra.mxu0 0.0
    %450 = vmatprep.subr.mxu0 0.0
    %451 = vmatpush2.xpose.msra.mxu0 0.0
    %452 = vmatprep.subr.mxu0 0.0
    %453 = vmatpush2.xpose.msra.mxu0 0.0
    %454 = vmatprep.subr.mxu0 0.0
    %455 = vmatpush2.xpose.msra.mxu0 0.0
    %456 = vmatprep.subr.mxu0 0.0
    %457 = vmatpush2.xpose.msra.mxu0 0.0
    %458 = vmatprep.subr.mxu0 0.0
    %459 = vmatpush2.xpose.msra.mxu0 0.0
    %460 = vmatprep.subr.mxu0 0.0
    %461 = vmatpush2.xpose.msra.mxu0 0.0
    %462 = vmatprep.subr.mxu0 0.0
    %463 = vmatpush2.xpose.msra.mxu0 0.0
    %464 = vmatprep.subr.mxu0 0.0
    %465 = vmatpush2.xpose.msra.mxu0 0.0
    %466 = vmatprep.subr.mxu0 0.0
    %467 = vmatpush2.xpose.msra.mxu0 0.0
    %468 = vmatprep.subr.mxu0 0.0
    %469 = vmatpush2.xpose.msra.mxu0 0.0
    %470 = vmatprep.subr.mxu0 0.0
    %471 = vmatpush2.xpose.msra.mxu0 0.0
    %472 = vmatprep.subr.mxu0 0.0
    %473 = vmatpush2.xpose.msra.mxu0 0.0
    %474 = vmatprep.subr.mxu0 0.0
    %475 = vmatpush2.xpose.msra.mxu0 0.0
    %476 = vmatprep.mubr.f32.mxu0 0.0
    %477 = vmatmul.mubr.f32.gmra.mxu0 %v404
    %v478 = vpop.f32.mrf.mxu0
    %v479 = vadd.f32 %v15, %v478
    %v480 = vpop.f32.mrf.mxu0
    %481 = vmatprep.mubr.f32.mxu0 0.0
    %482 = vmatmul.mubr.f32.gmra.mxu0 %v406
    %v483 = vpop.f32.mrf.mxu0
    %v484 = vadd.f32 %v16, %v483
    %v485 = vpop.f32.mrf.mxu0
    %486 = vdwg.mxu0
    %v487 = vsel %vm23, %v479, -inf
    %488 = vmax.xlane.f32.xlu0 %v487
    %v489 = vpop.xlane.xlu0 %488
    %v490 = vsel %vm23, %v484, -inf
    %491 = vmax.xlane.f32.xlu0 %v490
    %v492 = vpop.xlane.xlu0 %491
    %v493 = vsub.f32 %v479, %v489
    %v494 = vsub.f32 %v484, %v492
    %v495 = vmul.f32 %v493, 1.442695
    %v496 = vpow.pop %v495
    %v497 = vmul.f32 %v494, 1.442695
    %v498 = vpow.pop %v497
    %v499 = vsel %vm23, %v496, 0.0
    %500 = vadd.xlane.f32.xlu0 %v499
    %v501 = vpop.xlane.xlu0 %500
    %v502 = vsel %vm23, %v498, 0.0
    %503 = vadd.xlane.f32.xlu0 %v502
    %v504 = vpop.xlane.xlu0 %503
    %v505 = vrcp.pop %v501
    %v506 = vrcp.pop %v504
    %v507 = vmul.f32 %v496, %v505
    %v508 = vmul.f32 %v498, %v506
    %509 = vrot.lane.b32.xlu0 %v188, 48
    %v510 = vpop.permute.xlu0 %509
    %511 = vrot.lane.b32.xlu0 %v193, 48
    %v512 = vpop.permute.xlu0 %511
    %v516 = vsel %vm23, %v507, 0
    %v519 = vsel %vm23, %v508, 0
    %521 = vmatprep.subr.mxu0 0.0
    %522 = vmatpush1.msra.mxu0 0.0
    %523 = vmatprep.subr.mxu0 0.0
    %524 = vmatpush1.msra.mxu0 0.0
    %525 = vmatprep.subr.mxu0 0.0
    %526 = vmatpush1.msra.mxu0 0.0
    %527 = vmatprep.subr.mxu0 0.0
    %528 = vmatpush1.msra.mxu0 0.0
    %529 = vmatprep.subr.mxu0 0.0
    %530 = vmatpush1.msra.mxu0 0.0
    %531 = vmatprep.subr.mxu0 0.0
    %532 = vmatpush1.msra.mxu0 0.0
    %533 = vmatprep.subr.mxu0 0.0
    %534 = vmatpush1.msra.mxu0 0.0
    %535 = vmatprep.subr.mxu0 0.0
    %536 = vmatpush1.msra.mxu0 0.0
    %537 = vmatprep.subr.mxu0 0.0
    %538 = vmatpush1.msra.mxu0 0.0
    %539 = vmatprep.subr.mxu0 0.0
    %540 = vmatpush1.msra.mxu0 0.0
    %541 = vmatprep.subr.mxu0 0.0
    %542 = vmatpush1.msra.mxu0 0.0
    %543 = vmatprep.subr.mxu0 0.0
    %544 = vmatpush1.msra.mxu0 0.0
    %545 = vmatprep.subr.mxu0 0.0
    %546 = vmatpush1.msra.mxu0 0.0
    %547 = vmatprep.subr.mxu0 0.0
    %548 = vmatpush1.msra.mxu0 0.0
    %549 = vmatprep.subr.mxu0 0.0
    %550 = vmatpush1.msra.mxu0 %v512
    %551 = vmatprep.subr.mxu0 0.0
    %552 = vmatpush1.msra.mxu0 %v510
    %553 = vmatprep.subr.mxu0 0.0
    %554 = vmatpush2.msra.mxu0 0.0
    %555 = vmatprep.subr.mxu0 0.0
    %556 = vmatpush2.msra.mxu0 0.0
    %557 = vmatprep.subr.mxu0 0.0
    %558 = vmatpush2.msra.mxu0 0.0
    %559 = vmatprep.subr.mxu0 0.0
    %560 = vmatpush2.msra.mxu0 0.0
    %561 = vmatprep.subr.mxu0 0.0
    %562 = vmatpush2.msra.mxu0 0.0
    %563 = vmatprep.subr.mxu0 0.0
    %564 = vmatpush2.msra.mxu0 0.0
    %565 = vmatprep.subr.mxu0 0.0
    %566 = vmatpush2.msra.mxu0 0.0
    %567 = vmatprep.subr.mxu0 0.0
    %568 = vmatpush2.msra.mxu0 0.0
    %569 = vmatprep.subr.mxu0 0.0
    %570 = vmatpush2.msra.mxu0 0.0
    %571 = vmatprep.subr.mxu0 0.0
    %572 = vmatpush2.msra.mxu0 0.0
    %573 = vmatprep.subr.mxu0 0.0
    %574 = vmatpush2.msra.mxu0 0.0
    %575 = vmatprep.subr.mxu0 0.0
    %576 = vmatpush2.msra.mxu0 0.0
    %577 = vmatprep.subr.mxu0 0.0
    %578 = vmatpush2.msra.mxu0 0.0
    %579 = vmatprep.subr.mxu0 0.0
    %580 = vmatpush2.msra.mxu0 0.0
    %581 = vmatprep.subr.mxu0 0.0
    %582 = vmatpush2.msra.mxu0 0.0
    %583 = vmatprep.subr.mxu0 0.0
    %584 = vmatpush2.msra.mxu0 0.0
    %585 = vmatprep.mubr.f32.mxu0 0.0
    %586 = vmatmul.mubr.f32.gmra.mxu0 %v516
    %v587 = vpop.f32.mrf.mxu0
    %v588 = vadd.f32 0.0, %v587
    %v589 = vpop.f32.mrf.mxu0
    %590 = vmatprep.mubr.f32.mxu0 0.0
    %591 = vmatmul.mubr.f32.gmra.mxu0 %v519
    %v592 = vpop.f32.mrf.mxu0
    %v593 = vadd.f32 0.0, %v592
    %v594 = vpop.f32.mrf.mxu0
    %595 = vdwg.mxu0
    %v596 = vld [vmem:[%s1 + $0x60] sm:$0xff]
    %v597 = vld [vmem:[%s1 + $0x68] sm:$0xff]
    %v599 = vsel %vm23, %v588, 0
    %v602 = vsel %vm23, %v593, 0
    %604 = vmatprep.subr.mxu0 0.0
    %605 = vmatpush1.msra.mxu0 0.0
    %606 = vmatprep.subr.mxu0 0.0
    %607 = vmatpush1.msra.mxu0 0.0
    %608 = vmatprep.subr.mxu0 0.0
    %609 = vmatpush1.msra.mxu0 0.0
    %610 = vmatprep.subr.mxu0 0.0
    %611 = vmatpush1.msra.mxu0 0.0
    %612 = vmatprep.subr.mxu0 0.0
    %613 = vmatpush1.msra.mxu0 0.0
    %614 = vmatprep.subr.mxu0 0.0
    %615 = vmatpush1.msra.mxu0 0.0
    %616 = vmatprep.subr.mxu0 0.0
    %617 = vmatpush1.msra.mxu0 0.0
    %618 = vmatprep.subr.mxu0 0.0
    %619 = vmatpush1.msra.mxu0 0.0
    %620 = vmatprep.subr.mxu0 0.0
    %621 = vmatpush1.msra.mxu0 0.0
    %622 = vmatprep.subr.mxu0 0.0
    %623 = vmatpush1.msra.mxu0 0.0
    %624 = vmatprep.subr.mxu0 0.0
    %625 = vmatpush1.msra.mxu0 0.0
    %626 = vmatprep.subr.mxu0 0.0
    %627 = vmatpush1.msra.mxu0 0.0
    %628 = vmatprep.subr.mxu0 0.0
    %629 = vmatpush1.msra.mxu0 0.0
    %630 = vmatprep.subr.mxu0 0.0
    %631 = vmatpush1.msra.mxu0 0.0
    %632 = vmatprep.subr.mxu0 0.0
    %633 = vmatpush1.msra.mxu0 %v597
    %634 = vmatprep.subr.mxu0 0.0
    %635 = vmatpush1.msra.mxu0 %v596
    %636 = vmatprep.subr.mxu0 0.0
    %637 = vmatpush2.msra.mxu0 0.0
    %638 = vmatprep.subr.mxu0 0.0
    %639 = vmatpush2.msra.mxu0 0.0
    %640 = vmatprep.subr.mxu0 0.0
    %641 = vmatpush2.msra.mxu0 0.0
    %642 = vmatprep.subr.mxu0 0.0
    %643 = vmatpush2.msra.mxu0 0.0
    %644 = vmatprep.subr.mxu0 0.0
    %645 = vmatpush2.msra.mxu0 0.0
    %646 = vmatprep.subr.mxu0 0.0
    %647 = vmatpush2.msra.mxu0 0.0
    %648 = vmatprep.subr.mxu0 0.0
    %649 = vmatpush2.msra.mxu0 0.0
    %650 = vmatprep.subr.mxu0 0.0
    %651 = vmatpush2.msra.mxu0 0.0
    %652 = vmatprep.subr.mxu0 0.0
    %653 = vmatpush2.msra.mxu0 0.0
    %654 = vmatprep.subr.mxu0 0.0
    %655 = vmatpush2.msra.mxu0 0.0
    %656 = vmatprep.subr.mxu0 0.0
    %657 = vmatpush2.msra.mxu0 0.0
    %658 = vmatprep.subr.mxu0 0.0
    %659 = vmatpush2.msra.mxu0 0.0
    %660 = vmatprep.subr.mxu0 0.0
    %661 = vmatpush2.msra.mxu0 0.0
    %662 = vmatprep.subr.mxu0 0.0
    %663 = vmatpush2.msra.mxu0 0.0
    %664 = vmatprep.subr.mxu0 0.0
    %665 = vmatpush2.msra.mxu0 0.0
    %666 = vmatprep.subr.mxu0 0.0
    %667 = vmatpush2.msra.mxu0 0.0
    %668 = vmatprep.mubr.f32.mxu0 0.0
    %669 = vmatmul.mubr.f32.gmra.mxu0 %v599
    %v670 = vpop.f32.mrf.mxu0
    %v671 = vadd.f32 0.0, %v670
    %v672 = vpop.f32.mrf.mxu0
    %673 = vmatprep.mubr.f32.mxu0 0.0
    %674 = vmatmul.mubr.f32.gmra.mxu0 %v602
    %v675 = vpop.f32.mrf.mxu0
    %v676 = vadd.f32 0.0, %v675
    %v677 = vpop.f32.mrf.mxu0
    %678 = vdwg.mxu0
    %v680 = vsel %vm23, %v386, 0
    %v683 = vsel %vm23, %v391, 0
    %685 = vmatprep.subr.mxu0 0.0
    %686 = vmatpush1.msra.mxu0 0.0
    %687 = vmatprep.subr.mxu0 0.0
    %688 = vmatpush1.msra.mxu0 0.0
    %689 = vmatprep.subr.mxu0 0.0
    %690 = vmatpush1.msra.mxu0 0.0
    %691 = vmatprep.subr.mxu0 0.0
    %692 = vmatpush1.msra.mxu0 0.0
    %693 = vmatprep.subr.mxu0 0.0
    %694 = vmatpush1.msra.mxu0 0.0
    %695 = vmatprep.subr.mxu0 0.0
    %696 = vmatpush1.msra.mxu0 0.0
    %697 = vmatprep.subr.mxu0 0.0
    %698 = vmatpush1.msra.mxu0 0.0
    %699 = vmatprep.subr.mxu0 0.0
    %700 = vmatpush1.msra.mxu0 0.0
    %701 = vmatprep.subr.mxu0 0.0
    %702 = vmatpush1.msra.mxu0 0.0
    %703 = vmatprep.subr.mxu0 0.0
    %704 = vmatpush1.msra.mxu0 0.0
    %705 = vmatprep.subr.mxu0 0.0
    %706 = vmatpush1.msra.mxu0 0.0
    %707 = vmatprep.subr.mxu0 0.0
    %708 = vmatpush1.msra.mxu0 0.0
    %709 = vmatprep.subr.mxu0 0.0
    %710 = vmatpush1.msra.mxu0 0.0
    %711 = vmatprep.subr.mxu0 0.0
    %712 = vmatpush1.msra.mxu0 0.0
    %713 = vmatprep.subr.mxu0 0.0
    %714 = vmatpush1.msra.mxu0 %v395
    %715 = vmatprep.subr.mxu0 0.0
    %716 = vmatpush1.msra.mxu0 %v394
    %717 = vmatprep.subr.mxu0 0.0
    %718 = vmatpush2.msra.mxu0 0.0
    %719 = vmatprep.subr.mxu0 0.0
    %720 = vmatpush2.msra.mxu0 0.0
    %721 = vmatprep.subr.mxu0 0.0
    %722 = vmatpush2.msra.mxu0 0.0
    %723 = vmatprep.subr.mxu0 0.0
    %724 = vmatpush2.msra.mxu0 0.0
    %725 = vmatprep.subr.mxu0 0.0
    %726 = vmatpush2.msra.mxu0 0.0
    %727 = vmatprep.subr.mxu0 0.0
    %728 = vmatpush2.msra.mxu0 0.0
    %729 = vmatprep.subr.mxu0 0.0
    %730 = vmatpush2.msra.mxu0 0.0
    %731 = vmatprep.subr.mxu0 0.0
    %732 = vmatpush2.msra.mxu0 0.0
    %733 = vmatprep.subr.mxu0 0.0
    %734 = vmatpush2.msra.mxu0 0.0
    %735 = vmatprep.subr.mxu0 0.0
    %736 = vmatpush2.msra.mxu0 0.0
    %737 = vmatprep.subr.mxu0 0.0
    %738 = vmatpush2.msra.mxu0 0.0
    %739 = vmatprep.subr.mxu0 0.0
    %740 = vmatpush2.msra.mxu0 0.0
    %741 = vmatprep.subr.mxu0 0.0
    %742 = vmatpush2.msra.mxu0 0.0
    %743 = vmatprep.subr.mxu0 0.0
    %744 = vmatpush2.msra.mxu0 0.0
    %745 = vmatprep.subr.mxu0 0.0
    %746 = vmatpush2.msra.mxu0 0.0
    %747 = vmatprep.subr.mxu0 0.0
    %748 = vmatpush2.msra.mxu0 0.0
    %749 = vmatprep.mubr.f32.mxu0 0.0
    %750 = vmatmul.mubr.f32.gmra.mxu0 %v680
    %v751 = vpop.f32.mrf.mxu0
    %v752 = vadd.f32 %v671, %v751
    %v753 = vpop.f32.mrf.mxu0
    %754 = vmatprep.mubr.f32.mxu0 0.0
    %755 = vmatmul.mubr.f32.gmra.mxu0 %v683
    %v756 = vpop.f32.mrf.mxu0
    %v757 = vadd.f32 %v676, %v756
    %v758 = vpop.f32.mrf.mxu0
    %759 = vdwg.mxu0
    %v760 = vld [vmem:[%s2 + $0x1] sm:$0x1]
    %v761 = vlaneseq
    %v762 = vshrl.u32 %v761, 7
    %v763 = vsub.s32 0, %v762
    %v764 = vrot.slane %v760, %v763
    %v765 = vadd.f32 %v752, %v764
    %v766 = vadd.f32 %v757, %v764
    %v767 = vadd.f32 %v97, %v765
    %v768 = vadd.f32 %v102, %v766
    %v769 = vld [vmem:[%s2 + $0x2] sm:$0x1]
    %v770 = vld [vmem:[%s2 + $0x3] sm:$0x1]
    %v771 = vsel %vm114, %v767, 0.0
    %772 = vadd.xlane.f32.xlu0 %v771
    %v773 = vpop.xlane.xlu0 %772
    %v774 = vsel %vm114, %v768, 0.0
    %775 = vadd.xlane.f32.xlu0 %v774
    %v776 = vpop.xlane.xlu0 %775
    %v777 = vrcp.pop 32.0
    %v778 = vmul.f32 %v773, %v777
    %v779 = vmul.f32 %v776, %v777
    %v780 = vmul.f32 %v767, %v767
    %v781 = vmul.f32 %v768, %v768
    %v782 = vsel %vm114, %v780, 0.0
    %783 = vadd.xlane.f32.xlu0 %v782
    %v784 = vpop.xlane.xlu0 %783
    %v785 = vsel %vm114, %v781, 0.0
    %786 = vadd.xlane.f32.xlu0 %v785
    %v787 = vpop.xlane.xlu0 %786
    %v788 = vmul.f32 %v784, %v777
    %v789 = vmul.f32 %v787, %v777
    %v790 = vmul.f32 %v778, %v778
    %v791 = vmul.f32 %v779, %v779
    %v792 = vsub.f32 %v788, %v790
    %v793 = vsub.f32 %v789, %v791
    %v794 = vsub.f32 %v767, %v778
    %v795 = vsub.f32 %v768, %v779
    %v796 = vadd.f32 %v792, 1e-05
    %v797 = vadd.f32 %v793, 1e-05
    %v798 = vrsqrt.pop %v796
    %v799 = vrsqrt.pop %v797
    %v800 = vmul.f32 %v794, %v798
    %v801 = vmul.f32 %v795, %v799
    %v802 = vlaneseq
    %v803 = vshrl.u32 %v802, 7
    %v804 = vsub.s32 0, %v803
    %v805 = vrot.slane %v769, %v804
    %v806 = vmul.f32 %v800, %v805
    %v807 = vmul.f32 %v801, %v805
    %v808 = vlaneseq
    %v809 = vshrl.u32 %v808, 7
    %v810 = vsub.s32 0, %v809
    %v811 = vrot.slane %v770, %v810
    %v812 = vadd.f32 %v806, %v811
    %v813 = vadd.f32 %v807, %v811
    %v814 = vld [vmem:[%s1 + $0x70] sm:$0xff]
    %v815 = vld [vmem:[%s1 + $0x78] sm:$0xff]
    %v816 = vld [vmem:[%s1 + $0x80] sm:$0xff]
    %v817 = vld [vmem:[%s1 + $0x88] sm:$0xff]
    %v818 = vld [vmem:[%s2 + $0x4] sm:$0x1]
    %v819 = vlaneseq
    %v820 = vshrl.u32 %v819, 7
    %v821 = vsub.s32 0, %v820
    %v822 = vrot.slane %v818, %v821
    %v824 = vsel %vm114, %v812, 0
    %v827 = vsel %vm114, %v813, 0
    %829 = vmatprep.subr.mxu0 0.0
    %830 = vmatpush1.msra.mxu0 0.0
    %831 = vmatprep.subr.mxu0 0.0
    %832 = vmatpush1.msra.mxu0 0.0
    %833 = vmatprep.subr.mxu0 0.0
    %834 = vmatpush1.msra.mxu0 0.0
    %835 = vmatprep.subr.mxu0 0.0
    %836 = vmatpush1.msra.mxu0 0.0
    %837 = vmatprep.subr.mxu0 0.0
    %838 = vmatpush1.msra.mxu0 0.0
    %839 = vmatprep.subr.mxu0 0.0
    %840 = vmatpush1.msra.mxu0 0.0
    %841 = vmatprep.subr.mxu0 0.0
    %842 = vmatpush1.msra.mxu0 0.0
    %843 = vmatprep.subr.mxu0 0.0
    %844 = vmatpush1.msra.mxu0 0.0
    %845 = vmatprep.subr.mxu0 0.0
    %846 = vmatpush1.msra.mxu0 0.0
    %847 = vmatprep.subr.mxu0 0.0
    %848 = vmatpush1.msra.mxu0 0.0
    %849 = vmatprep.subr.mxu0 0.0
    %850 = vmatpush1.msra.mxu0 0.0
    %851 = vmatprep.subr.mxu0 0.0
    %852 = vmatpush1.msra.mxu0 0.0
    %853 = vmatprep.subr.mxu0 0.0
    %854 = vmatpush1.msra.mxu0 %v817
    %855 = vmatprep.subr.mxu0 0.0
    %856 = vmatpush1.msra.mxu0 %v816
    %857 = vmatprep.subr.mxu0 0.0
    %858 = vmatpush1.msra.mxu0 %v815
    %859 = vmatprep.subr.mxu0 0.0
    %860 = vmatpush1.msra.mxu0 %v814
    %861 = vmatprep.subr.mxu0 0.0
    %862 = vmatpush2.msra.mxu0 0.0
    %863 = vmatprep.subr.mxu0 0.0
    %864 = vmatpush2.msra.mxu0 0.0
    %865 = vmatprep.subr.mxu0 0.0
    %866 = vmatpush2.msra.mxu0 0.0
    %867 = vmatprep.subr.mxu0 0.0
    %868 = vmatpush2.msra.mxu0 0.0
    %869 = vmatprep.subr.mxu0 0.0
    %870 = vmatpush2.msra.mxu0 0.0
    %871 = vmatprep.subr.mxu0 0.0
    %872 = vmatpush2.msra.mxu0 0.0
    %873 = vmatprep.subr.mxu0 0.0
    %874 = vmatpush2.msra.mxu0 0.0
    %875 = vmatprep.subr.mxu0 0.0
    %876 = vmatpush2.msra.mxu0 0.0
    %877 = vmatprep.subr.mxu0 0.0
    %878 = vmatpush2.msra.mxu0 0.0
    %879 = vmatprep.subr.mxu0 0.0
    %880 = vmatpush2.msra.mxu0 0.0
    %881 = vmatprep.subr.mxu0 0.0
    %882 = vmatpush2.msra.mxu0 0.0
    %883 = vmatprep.subr.mxu0 0.0
    %884 = vmatpush2.msra.mxu0 0.0
    %885 = vmatprep.subr.mxu0 0.0
    %886 = vmatpush2.msra.mxu0 0.0
    %887 = vmatprep.subr.mxu0 0.0
    %888 = vmatpush2.msra.mxu0 0.0
    %889 = vmatprep.subr.mxu0 0.0
    %890 = vmatpush2.msra.mxu0 0.0
    %891 = vmatprep.subr.mxu0 0.0
    %892 = vmatpush2.msra.mxu0 0.0
    %893 = vmatprep.mubr.f32.mxu0 0.0
    %894 = vmatmul.mubr.f32.gmra.mxu0 %v824
    %v895 = vpop.f32.mrf.mxu0
    %v896 = vadd.f32 %v822, %v895
    %v897 = vpop.f32.mrf.mxu0
    %898 = vmatprep.mubr.f32.mxu0 0.0
    %899 = vmatmul.mubr.f32.gmra.mxu0 %v827
    %v900 = vpop.f32.mrf.mxu0
    %v901 = vadd.f32 %v822, %v900
    %v902 = vpop.f32.mrf.mxu0
    %903 = vdwg.mxu0
    %v904 = vmax.f32 %v896, 0.0
    %v905 = vmax.f32 %v901, 0.0
    %v906 = vld [vmem:[%s1 + $0x90] sm:$0xff]
    %v907 = vld [vmem:[%s1 + $0x98] sm:$0xff]
    %v908 = vld [vmem:[%s1 + $0xa0] sm:$0xff]
    %v909 = vld [vmem:[%s1 + $0xa8] sm:$0xff]
    %v910 = vld [vmem:[%s1 + $0xb0] sm:$0xff]
    %v911 = vld [vmem:[%s1 + $0xb8] sm:$0xff]
    %v912 = vld [vmem:[%s1 + $0xc0] sm:$0xff]
    %v913 = vld [vmem:[%s1 + $0xc8] sm:$0xff]
    %v914 = vld [vmem:[%s2 + $0x5] sm:$0x1]
    %v915 = vlaneseq
    %v916 = vshrl.u32 %v915, 7
    %v917 = vsub.s32 0, %v916
    %v918 = vrot.slane %v914, %v917
    %vm919 = vcmask 523264
    %v921 = vsel %vm919, %v904, 0
    %v924 = vsel %vm919, %v905, 0
    %926 = vmatprep.subr.mxu0 0.0
    %927 = vmatpush1.msra.mxu0 0.0
    %928 = vmatprep.subr.mxu0 0.0
    %929 = vmatpush1.msra.mxu0 0.0
    %930 = vmatprep.subr.mxu0 0.0
    %931 = vmatpush1.msra.mxu0 0.0
    %932 = vmatprep.subr.mxu0 0.0
    %933 = vmatpush1.msra.mxu0 0.0
    %934 = vmatprep.subr.mxu0 0.0
    %935 = vmatpush1.msra.mxu0 0.0
    %936 = vmatprep.subr.mxu0 0.0
    %937 = vmatpush1.msra.mxu0 0.0
    %938 = vmatprep.subr.mxu0 0.0
    %939 = vmatpush1.msra.mxu0 0.0
    %940 = vmatprep.subr.mxu0 0.0
    %941 = vmatpush1.msra.mxu0 0.0
    %942 = vmatprep.subr.mxu0 0.0
    %943 = vmatpush1.msra.mxu0 %v913
    %944 = vmatprep.subr.mxu0 0.0
    %945 = vmatpush1.msra.mxu0 %v912
    %946 = vmatprep.subr.mxu0 0.0
    %947 = vmatpush1.msra.mxu0 %v911
    %948 = vmatprep.subr.mxu0 0.0
    %949 = vmatpush1.msra.mxu0 %v910
    %950 = vmatprep.subr.mxu0 0.0
    %951 = vmatpush1.msra.mxu0 %v909
    %952 = vmatprep.subr.mxu0 0.0
    %953 = vmatpush1.msra.mxu0 %v908
    %954 = vmatprep.subr.mxu0 0.0
    %955 = vmatpush1.msra.mxu0 %v907
    %956 = vmatprep.subr.mxu0 0.0
    %957 = vmatpush1.msra.mxu0 %v906
    %958 = vmatprep.subr.mxu0 0.0
    %959 = vmatpush2.msra.mxu0 0.0
    %960 = vmatprep.subr.mxu0 0.0
    %961 = vmatpush2.msra.mxu0 0.0
    %962 = vmatprep.subr.mxu0 0.0
    %963 = vmatpush2.msra.mxu0 0.0
    %964 = vmatprep.subr.mxu0 0.0
    %965 = vmatpush2.msra.mxu0 0.0
    %966 = vmatprep.subr.mxu0 0.0
    %967 = vmatpush2.msra.mxu0 0.0
    %968 = vmatprep.subr.mxu0 0.0
    %969 = vmatpush2.msra.mxu0 0.0
    %970 = vmatprep.subr.mxu0 0.0
    %971 = vmatpush2.msra.mxu0 0.0
    %972 = vmatprep.subr.mxu0 0.0
    %973 = vmatpush2.msra.mxu0 0.0
    %974 = vmatprep.subr.mxu0 0.0
    %975 = vmatpush2.msra.mxu0 0.0
    %976 = vmatprep.subr.mxu0 0.0
    %977 = vmatpush2.msra.mxu0 0.0
    %978 = vmatprep.subr.mxu0 0.0
    %979 = vmatpush2.msra.mxu0 0.0
    %980 = vmatprep.subr.mxu0 0.0
    %981 = vmatpush2.msra.mxu0 0.0
    %982 = vmatprep.subr.mxu0 0.0
    %983 = vmatpush2.msra.mxu0 0.0
    %984 = vmatprep.subr.mxu0 0.0
    %985 = vmatpush2.msra.mxu0 0.0
    %986 = vmatprep.subr.mxu0 0.0
    %987 = vmatpush2.msra.mxu0 0.0
    %988 = vmatprep.subr.mxu0 0.0
    %989 = vmatpush2.msra.mxu0 0.0
    %990 = vmatprep.mubr.f32.mxu0 0.0
    %991 = vmatmul.mubr.f32.gmra.mxu0 %v921
    %v992 = vpop.f32.mrf.mxu0
    %v993 = vadd.f32 %v918, %v992
    %v994 = vpop.f32.mrf.mxu0
    %995 = vmatprep.mubr.f32.mxu0 0.0
    %996 = vmatmul.mubr.f32.gmra.mxu0 %v924
    %v997 = vpop.f32.mrf.mxu0
    %v998 = vadd.f32 %v918, %v997
    %v999 = vpop.f32.mrf.mxu0
    %1000 = vdwg.mxu0
    %v1001 = vadd.f32 %v812, %v993
    %v1002 = vadd.f32 %v813, %v998
    %v1003 = vld [vmem:[%s2 + $0x6] sm:$0x1]
    %v1004 = vld [vmem:[%s2 + $0x7] sm:$0x1]
    %v1005 = vsel %vm114, %v1001, 0.0
    %1006 = vadd.xlane.f32.xlu0 %v1005
    %v1007 = vpop.xlane.xlu0 %1006
    %v1008 = vsel %vm114, %v1002, 0.0
    %1009 = vadd.xlane.f32.xlu0 %v1008
    %v1010 = vpop.xlane.xlu0 %1009
    %v1011 = vmul.f32 %v1007, %v777
    %v1012 = vmul.f32 %v1010, %v777
    %v1013 = vmul.f32 %v1001, %v1001
    %v1014 = vmul.f32 %v1002, %v1002
    %v1015 = vsel %vm114, %v1013, 0.0
    %1016 = vadd.xlane.f32.xlu0 %v1015
    %v1017 = vpop.xlane.xlu0 %1016
    %v1018 = vsel %vm114, %v1014, 0.0
    %1019 = vadd.xlane.f32.xlu0 %v1018
    %v1020 = vpop.xlane.xlu0 %1019
    %v1021 = vmul.f32 %v1017, %v777
    %v1022 = vmul.f32 %v1020, %v777
    %v1023 = vmul.f32 %v1011, %v1011
    %v1024 = vmul.f32 %v1012, %v1012
    %v1025 = vsub.f32 %v1021, %v1023
    %v1026 = vsub.f32 %v1022, %v1024
    %v1027 = vsub.f32 %v1001, %v1011
    %v1028 = vsub.f32 %v1002, %v1012
    %v1029 = vadd.f32 %v1025, 1e-05
    %v1030 = vadd.f32 %v1026, 1e-05
    %v1031 = vrsqrt.pop %v1029
    %v1032 = vrsqrt.pop %v1030
    %v1033 = vmul.f32 %v1027, %v1031
    %v1034 = vmul.f32 %v1028, %v1032
    %v1035 = vlaneseq
    %v1036 = vshrl.u32 %v1035, 7
    %v1037 = vsub.s32 0, %v1036
    %v1038 = vrot.slane %v1003, %v1037
    %v1039 = vmul.f32 %v1033, %v1038
    %v1040 = vmul.f32 %v1034, %v1038
    %v1041 = vlaneseq
    %v1042 = vshrl.u32 %v1041, 7
    %v1043 = vsub.s32 0, %v1042
    %v1044 = vrot.slane %v1004, %v1043
    %v1045 = vadd.f32 %v1039, %v1044
    %v1046 = vadd.f32 %v1040, %v1044
    %v1047 = vld [vmem:[%s1 + $0xd0] sm:$0xff]
    %v1048 = vld [vmem:[%s1 + $0xd8] sm:$0xff]
    %v1049 = vld [vmem:[%s1 + $0xe0] sm:$0xff]
    %v1050 = vld [vmem:[%s1 + $0xe8] sm:$0xff]
    %v1051 = vld [vmem:[%s2 + $0x8] sm:$0x1]
    %v1052 = vlaneseq
    %v1053 = vshrl.u32 %v1052, 7
    %v1054 = vsub.s32 0, %v1053
    %v1055 = vrot.slane %v1051, %v1054
    %v1057 = vsel %vm114, %v1045, 0
    %v1060 = vsel %vm114, %v1046, 0
    %1062 = vmatprep.subr.mxu0 0.0
    %1063 = vmatpush1.msra.mxu0 0.0
    %1064 = vmatprep.subr.mxu0 0.0
    %1065 = vmatpush1.msra.mxu0 0.0
    %1066 = vmatprep.subr.mxu0 0.0
    %1067 = vmatpush1.msra.mxu0 0.0
    %1068 = vmatprep.subr.mxu0 0.0
    %1069 = vmatpush1.msra.mxu0 0.0
    %1070 = vmatprep.subr.mxu0 0.0
    %1071 = vmatpush1.msra.mxu0 0.0
    %1072 = vmatprep.subr.mxu0 0.0
    %1073 = vmatpush1.msra.mxu0 0.0
    %1074 = vmatprep.subr.mxu0 0.0
    %1075 = vmatpush1.msra.mxu0 0.0
    %1076 = vmatprep.subr.mxu0 0.0
    %1077 = vmatpush1.msra.mxu0 0.0
    %1078 = vmatprep.subr.mxu0 0.0
    %1079 = vmatpush1.msra.mxu0 0.0
    %1080 = vmatprep.subr.mxu0 0.0
    %1081 = vmatpush1.msra.mxu0 0.0
    %1082 = vmatprep.subr.mxu0 0.0
    %1083 = vmatpush1.msra.mxu0 0.0
    %1084 = vmatprep.subr.mxu0 0.0
    %1085 = vmatpush1.msra.mxu0 0.0
    %1086 = vmatprep.subr.mxu0 0.0
    %1087 = vmatpush1.msra.mxu0 %v1050
    %1088 = vmatprep.subr.mxu0 0.0
    %1089 = vmatpush1.msra.mxu0 %v1049
    %1090 = vmatprep.subr.mxu0 0.0
    %1091 = vmatpush1.msra.mxu0 %v1048
    %1092 = vmatprep.subr.mxu0 0.0
    %1093 = vmatpush1.msra.mxu0 %v1047
    %1094 = vmatprep.subr.mxu0 0.0
    %1095 = vmatpush2.msra.mxu0 0.0
    %1096 = vmatprep.subr.mxu0 0.0
    %1097 = vmatpush2.msra.mxu0 0.0
    %1098 = vmatprep.subr.mxu0 0.0
    %1099 = vmatpush2.msra.mxu0 0.0
    %1100 = vmatprep.subr.mxu0 0.0
    %1101 = vmatpush2.msra.mxu0 0.0
    %1102 = vmatprep.subr.mxu0 0.0
    %1103 = vmatpush2.msra.mxu0 0.0
    %1104 = vmatprep.subr.mxu0 0.0
    %1105 = vmatpush2.msra.mxu0 0.0
    %1106 = vmatprep.subr.mxu0 0.0
    %1107 = vmatpush2.msra.mxu0 0.0
    %1108 = vmatprep.subr.mxu0 0.0
    %1109 = vmatpush2.msra.mxu0 0.0
    %1110 = vmatprep.subr.mxu0 0.0
    %1111 = vmatpush2.msra.mxu0 0.0
    %1112 = vmatprep.subr.mxu0 0.0
    %1113 = vmatpush2.msra.mxu0 0.0
    %1114 = vmatprep.subr.mxu0 0.0
    %1115 = vmatpush2.msra.mxu0 0.0
    %1116 = vmatprep.subr.mxu0 0.0
    %1117 = vmatpush2.msra.mxu0 0.0
    %1118 = vmatprep.subr.mxu0 0.0
    %1119 = vmatpush2.msra.mxu0 0.0
    %1120 = vmatprep.subr.mxu0 0.0
    %1121 = vmatpush2.msra.mxu0 0.0
    %1122 = vmatprep.subr.mxu0 0.0
    %1123 = vmatpush2.msra.mxu0 0.0
    %1124 = vmatprep.subr.mxu0 0.0
    %1125 = vmatpush2.msra.mxu0 0.0
    %1126 = vmatprep.mubr.f32.mxu0 0.0
    %1127 = vmatmul.mubr.f32.gmra.mxu0 %v1057
    %v1128 = vpop.f32.mrf.mxu0
    %v1129 = vadd.f32 %v1055, %v1128
    %v1130 = vpop.f32.mrf.mxu0
    %1131 = vmatprep.mubr.f32.mxu0 0.0
    %1132 = vmatmul.mubr.f32.gmra.mxu0 %v1060
    %v1133 = vpop.f32.mrf.mxu0
    %v1134 = vadd.f32 %v1055, %v1133
    %v1135 = vpop.f32.mrf.mxu0
    %1136 = vdwg.mxu0
    %1139 = vrot.lane.b32.xlu0 %v1129, 96
    %v1140 = vpop.permute.xlu0 %1139
    %1141 = vrot.lane.b32.xlu0 %v1134, 96
    %v1142 = vpop.permute.xlu0 %1141
    %v1143 = vsel %vm23, %v1129, 0
    %v1145 = vsel %vm23, %v1134, 0
    %v1147 = vsel %vm23, %v1140, 0
    %v1149 = vsel %vm23, %v1142, 0
    %1151 = vmatprep.subr.mxu0 0.0
    %1152 = vmatpush1.xpose.msra.mxu0 0.0
    %1153 = vmatprep.subr.mxu0 0.0
    %1154 = vmatpush1.xpose.msra.mxu0 0.0
    %1155 = vmatprep.subr.mxu0 0.0
    %1156 = vmatpush1.xpose.msra.mxu0 0.0
    %1157 = vmatprep.subr.mxu0 0.0
    %1158 = vmatpush1.xpose.msra.mxu0 0.0
    %1159 = vmatprep.subr.mxu0 0.0
    %1160 = vmatpush1.xpose.msra.mxu0 0.0
    %1161 = vmatprep.subr.mxu0 0.0
    %1162 = vmatpush1.xpose.msra.mxu0 0.0
    %1163 = vmatprep.subr.mxu0 0.0
    %1164 = vmatpush1.xpose.msra.mxu0 0.0
    %1165 = vmatprep.subr.mxu0 0.0
    %1166 = vmatpush1.xpose.msra.mxu0 0.0
    %1167 = vmatprep.subr.mxu0 0.0
    %1168 = vmatpush1.xpose.msra.mxu0 0.0
    %1169 = vmatprep.subr.mxu0 0.0
    %1170 = vmatpush1.xpose.msra.mxu0 0.0
    %1171 = vmatprep.subr.mxu0 0.0
    %1172 = vmatpush1.xpose.msra.mxu0 0.0
    %1173 = vmatprep.subr.mxu0 0.0
    %1174 = vmatpush1.xpose.msra.mxu0 0.0
    %1175 = vmatprep.subr.mxu0 0.0
    %1176 = vmatpush1.xpose.msra.mxu0 0.0
    %1177 = vmatprep.subr.mxu0 0.0
    %1178 = vmatpush1.xpose.msra.mxu0 0.0
    %1179 = vmatprep.subr.mxu0 0.0
    %1180 = vmatpush1.xpose.msra.mxu0 %v1149
    %1181 = vmatprep.subr.mxu0 0.0
    %1182 = vmatpush1.xpose.msra.mxu0 %v1147
    %1183 = vmatprep.subr.mxu0 0.0
    %1184 = vmatpush2.xpose.msra.mxu0 0.0
    %1185 = vmatprep.subr.mxu0 0.0
    %1186 = vmatpush2.xpose.msra.mxu0 0.0
    %1187 = vmatprep.subr.mxu0 0.0
    %1188 = vmatpush2.xpose.msra.mxu0 0.0
    %1189 = vmatprep.subr.mxu0 0.0
    %1190 = vmatpush2.xpose.msra.mxu0 0.0
    %1191 = vmatprep.subr.mxu0 0.0
    %1192 = vmatpush2.xpose.msra.mxu0 0.0
    %1193 = vmatprep.subr.mxu0 0.0
    %1194 = vmatpush2.xpose.msra.mxu0 0.0
    %1195 = vmatprep.subr.mxu0 0.0
    %1196 = vmatpush2.xpose.msra.mxu0 0.0
    %1197 = vmatprep.subr.mxu0 0.0
    %1198 = vmatpush2.xpose.msra.mxu0 0.0
    %1199 = vmatprep.subr.mxu0 0.0
    %1200 = vmatpush2.xpose.msra.mxu0 0.0
    %1201 = vmatprep.subr.mxu0 0.0
    %1202 = vmatpush2.xpose.msra.mxu0 0.0
    %1203 = vmatprep.subr.mxu0 0.0
    %1204 = vmatpush2.xpose.msra.mxu0 0.0
    %1205 = vmatprep.subr.mxu0 0.0
    %1206 = vmatpush2.xpose.msra.mxu0 0.0
    %1207 = vmatprep.subr.mxu0 0.0
    %1208 = vmatpush2.xpose.msra.mxu0 0.0
    %1209 = vmatprep.subr.mxu0 0.0
    %1210 = vmatpush2.xpose.msra.mxu0 0.0
    %1211 = vmatprep.subr.mxu0 0.0
    %1212 = vmatpush2.xpose.msra.mxu0 0.0
    %1213 = vmatprep.subr.mxu0 0.0
    %1214 = vmatpush2.xpose.msra.mxu0 0.0
    %1215 = vmatprep.mubr.f32.mxu0 0.0
    %1216 = vmatmul.mubr.f32.gmra.mxu0 %v1143
    %v1217 = vpop.f32.mrf.mxu0
    %v1218 = vadd.f32 %v15, %v1217
    %v1219 = vpop.f32.mrf.mxu0
    %1220 = vmatprep.mubr.f32.mxu0 0.0
    %1221 = vmatmul.mubr.f32.gmra.mxu0 %v1145
    %v1222 = vpop.f32.mrf.mxu0
    %v1223 = vadd.f32 %v16, %v1222
    %v1224 = vpop.f32.mrf.mxu0
    %1225 = vdwg.mxu0
    %v1226 = vsel %vm23, %v1218, -inf
    %1227 = vmax.xlane.f32.xlu0 %v1226
    %v1228 = vpop.xlane.xlu0 %1227
    %v1229 = vsel %vm23, %v1223, -inf
    %1230 = vmax.xlane.f32.xlu0 %v1229
    %v1231 = vpop.xlane.xlu0 %1230
    %v1232 = vsub.f32 %v1218, %v1228
    %v1233 = vsub.f32 %v1223, %v1231
    %v1234 = vmul.f32 %v1232, 1.442695
    %v1235 = vpow.pop %v1234
    %v1236 = vmul.f32 %v1233, 1.442695
    %v1237 = vpow.pop %v1236
    %v1238 = vsel %vm23, %v1235, 0.0
    %1239 = vadd.xlane.f32.xlu0 %v1238
    %v1240 = vpop.xlane.xlu0 %1239
    %v1241 = vsel %vm23, %v1237, 0.0
    %1242 = vadd.xlane.f32.xlu0 %v1241
    %v1243 = vpop.xlane.xlu0 %1242
    %v1244 = vrcp.pop %v1240
    %v1245 = vrcp.pop %v1243
    %v1246 = vmul.f32 %v1235, %v1244
    %v1247 = vmul.f32 %v1237, %v1245
    %1248 = vrot.lane.b32.xlu0 %v1129, 64
    %v1249 = vpop.permute.xlu0 %1248
    %1250 = vrot.lane.b32.xlu0 %v1134, 64
    %v1251 = vpop.permute.xlu0 %1250
    %v1255 = vsel %vm23, %v1246, 0
    %v1258 = vsel %vm23, %v1247, 0
    %1260 = vmatprep.subr.mxu0 0.0
    %1261 = vmatpush1.msra.mxu0 0.0
    %1262 = vmatprep.subr.mxu0 0.0
    %1263 = vmatpush1.msra.mxu0 0.0
    %1264 = vmatprep.subr.mxu0 0.0
    %1265 = vmatpush1.msra.mxu0 0.0
    %1266 = vmatprep.subr.mxu0 0.0
    %1267 = vmatpush1.msra.mxu0 0.0
    %1268 = vmatprep.subr.mxu0 0.0
    %1269 = vmatpush1.msra.mxu0 0.0
    %1270 = vmatprep.subr.mxu0 0.0
    %1271 = vmatpush1.msra.mxu0 0.0
    %1272 = vmatprep.subr.mxu0 0.0
    %1273 = vmatpush1.msra.mxu0 0.0
    %1274 = vmatprep.subr.mxu0 0.0
    %1275 = vmatpush1.msra.mxu0 0.0
    %1276 = vmatprep.subr.mxu0 0.0
    %1277 = vmatpush1.msra.mxu0 0.0
    %1278 = vmatprep.subr.mxu0 0.0
    %1279 = vmatpush1.msra.mxu0 0.0
    %1280 = vmatprep.subr.mxu0 0.0
    %1281 = vmatpush1.msra.mxu0 0.0
    %1282 = vmatprep.subr.mxu0 0.0
    %1283 = vmatpush1.msra.mxu0 0.0
    %1284 = vmatprep.subr.mxu0 0.0
    %1285 = vmatpush1.msra.mxu0 0.0
    %1286 = vmatprep.subr.mxu0 0.0
    %1287 = vmatpush1.msra.mxu0 0.0
    %1288 = vmatprep.subr.mxu0 0.0
    %1289 = vmatpush1.msra.mxu0 %v1251
    %1290 = vmatprep.subr.mxu0 0.0
    %1291 = vmatpush1.msra.mxu0 %v1249
    %1292 = vmatprep.subr.mxu0 0.0
    %1293 = vmatpush2.msra.mxu0 0.0
    %1294 = vmatprep.subr.mxu0 0.0
    %1295 = vmatpush2.msra.mxu0 0.0
    %1296 = vmatprep.subr.mxu0 0.0
    %1297 = vmatpush2.msra.mxu0 0.0
    %1298 = vmatprep.subr.mxu0 0.0
    %1299 = vmatpush2.msra.mxu0 0.0
    %1300 = vmatprep.subr.mxu0 0.0
    %1301 = vmatpush2.msra.mxu0 0.0
    %1302 = vmatprep.subr.mxu0 0.0
    %1303 = vmatpush2.msra.mxu0 0.0
    %1304 = vmatprep.subr.mxu0 0.0
    %1305 = vmatpush2.msra.mxu0 0.0
    %1306 = vmatprep.subr.mxu0 0.0
    %1307 = vmatpush2.msra.mxu0 0.0
    %1308 = vmatprep.subr.mxu0 0.0
    %1309 = vmatpush2.msra.mxu0 0.0
    %1310 = vmatprep.subr.mxu0 0.0
    %1311 = vmatpush2.msra.mxu0 0.0
    %1312 = vmatprep.subr.mxu0 0.0
    %1313 = vmatpush2.msra.mxu0 0.0
    %1314 = vmatprep.subr.mxu0 0.0
    %1315 = vmatpush2.msra.mxu0 0.0
    %1316 = vmatprep.subr.mxu0 0.0
    %1317 = vmatpush2.msra.mxu0 0.0
    %1318 = vmatprep.subr.mxu0 0.0
    %1319 = vmatpush2.msra.mxu0 0.0
    %1320 = vmatprep.subr.mxu0 0.0
    %1321 = vmatpush2.msra.mxu0 0.0
    %1322 = vmatprep.subr.mxu0 0.0
    %1323 = vmatpush2.msra.mxu0 0.0
    %1324 = vmatprep.mubr.f32.mxu0 0.0
    %1325 = vmatmul.mubr.f32.gmra.mxu0 %v1255
    %v1326 = vpop.f32.mrf.mxu0
    %v1327 = vadd.f32 0.0, %v1326
    %v1328 = vpop.f32.mrf.mxu0
    %1329 = vmatprep.mubr.f32.mxu0 0.0
    %1330 = vmatmul.mubr.f32.gmra.mxu0 %v1258
    %v1331 = vpop.f32.mrf.mxu0
    %v1332 = vadd.f32 0.0, %v1331
    %v1333 = vpop.f32.mrf.mxu0
    %1334 = vdwg.mxu0
    %v1335 = vld [vmem:[%s1 + $0xf0] sm:$0xff]
    %v1336 = vld [vmem:[%s1 + $0xf8] sm:$0xff]
    %1337 = vrot.lane.b32.xlu0 %v1129, 112
    %v1338 = vpop.permute.xlu0 %1337
    %1339 = vrot.lane.b32.xlu0 %v1134, 112
    %v1340 = vpop.permute.xlu0 %1339
    %1341 = vrot.lane.b32.xlu0 %v1129, 80
    %v1342 = vpop.permute.xlu0 %1341
    %1343 = vrot.lane.b32.xlu0 %v1134, 80
    %v1344 = vpop.permute.xlu0 %1343
    %v1345 = vsel %vm23, %v1338, 0
    %v1347 = vsel %vm23, %v1340, 0
    %v1349 = vsel %vm23, %v1342, 0
    %v1351 = vsel %vm23, %v1344, 0
    %1353 = vmatprep.subr.mxu0 0.0
    %1354 = vmatpush1.xpose.msra.mxu0 0.0
    %1355 = vmatprep.subr.mxu0 0.0
    %1356 = vmatpush1.xpose.msra.mxu0 0.0
    %1357 = vmatprep.subr.mxu0 0.0
    %1358 = vmatpush1.xpose.msra.mxu0 0.0
    %1359 = vmatprep.subr.mxu0 0.0
    %1360 = vmatpush1.xpose.msra.mxu0 0.0
    %1361 = vmatprep.subr.mxu0 0.0
    %1362 = vmatpush1.xpose.msra.mxu0 0.0
    %1363 = vmatprep.subr.mxu0 0.0
    %1364 = vmatpush1.xpose.msra.mxu0 0.0
    %1365 = vmatprep.subr.mxu0 0.0
    %1366 = vmatpush1.xpose.msra.mxu0 0.0
    %1367 = vmatprep.subr.mxu0 0.0
    %1368 = vmatpush1.xpose.msra.mxu0 0.0
    %1369 = vmatprep.subr.mxu0 0.0
    %1370 = vmatpush1.xpose.msra.mxu0 0.0
    %1371 = vmatprep.subr.mxu0 0.0
    %1372 = vmatpush1.xpose.msra.mxu0 0.0
    %1373 = vmatprep.subr.mxu0 0.0
    %1374 = vmatpush1.xpose.msra.mxu0 0.0
    %1375 = vmatprep.subr.mxu0 0.0
    %1376 = vmatpush1.xpose.msra.mxu0 0.0
    %1377 = vmatprep.subr.mxu0 0.0
    %1378 = vmatpush1.xpose.msra.mxu0 0.0
    %1379 = vmatprep.subr.mxu0 0.0
    %1380 = vmatpush1.xpose.msra.mxu0 0.0
    %1381 = vmatprep.subr.mxu0 0.0
    %1382 = vmatpush1.xpose.msra.mxu0 %v1351
    %1383 = vmatprep.subr.mxu0 0.0
    %1384 = vmatpush1.xpose.msra.mxu0 %v1349
    %1385 = vmatprep.subr.mxu0 0.0
    %1386 = vmatpush2.xpose.msra.mxu0 0.0
    %1387 = vmatprep.subr.mxu0 0.0
    %1388 = vmatpush2.xpose.msra.mxu0 0.0
    %1389 = vmatprep.subr.mxu0 0.0
    %1390 = vmatpush2.xpose.msra.mxu0 0.0
    %1391 = vmatprep.subr.mxu0 0.0
    %1392 = vmatpush2.xpose.msra.mxu0 0.0
    %1393 = vmatprep.subr.mxu0 0.0
    %1394 = vmatpush2.xpose.msra.mxu0 0.0
    %1395 = vmatprep.subr.mxu0 0.0
    %1396 = vmatpush2.xpose.msra.mxu0 0.0
    %1397 = vmatprep.subr.mxu0 0.0
    %1398 = vmatpush2.xpose.msra.mxu0 0.0
    %1399 = vmatprep.subr.mxu0 0.0
    %1400 = vmatpush2.xpose.msra.mxu0 0.0
    %1401 = vmatprep.subr.mxu0 0.0
    %1402 = vmatpush2.xpose.msra.mxu0 0.0
    %1403 = vmatprep.subr.mxu0 0.0
    %1404 = vmatpush2.xpose.msra.mxu0 0.0
    %1405 = vmatprep.subr.mxu0 0.0
    %1406 = vmatpush2.xpose.msra.mxu0 0.0
    %1407 = vmatprep.subr.mxu0 0.0
    %1408 = vmatpush2.xpose.msra.mxu0 0.0
    %1409 = vmatprep.subr.mxu0 0.0
    %1410 = vmatpush2.xpose.msra.mxu0 0.0
    %1411 = vmatprep.subr.mxu0 0.0
    %1412 = vmatpush2.xpose.msra.mxu0 0.0
    %1413 = vmatprep.subr.mxu0 0.0
    %1414 = vmatpush2.xpose.msra.mxu0 0.0
    %1415 = vmatprep.subr.mxu0 0.0
    %1416 = vmatpush2.xpose.msra.mxu0 0.0
    %1417 = vmatprep.mubr.f32.mxu0 0.0
    %1418 = vmatmul.mubr.f32.gmra.mxu0 %v1345
    %v1419 = vpop.f32.mrf.mxu0
    %v1420 = vadd.f32 %v15, %v1419
    %v1421 = vpop.f32.mrf.mxu0
    %1422 = vmatprep.mubr.f32.mxu0 0.0
    %1423 = vmatmul.mubr.f32.gmra.mxu0 %v1347
    %v1424 = vpop.f32.mrf.mxu0
    %v1425 = vadd.f32 %v16, %v1424
    %v1426 = vpop.f32.mrf.mxu0
    %1427 = vdwg.mxu0
    %v1428 = vsel %vm23, %v1420, -inf
    %1429 = vmax.xlane.f32.xlu0 %v1428
    %v1430 = vpop.xlane.xlu0 %1429
    %v1431 = vsel %vm23, %v1425, -inf
    %1432 = vmax.xlane.f32.xlu0 %v1431
    %v1433 = vpop.xlane.xlu0 %1432
    %v1434 = vsub.f32 %v1420, %v1430
    %v1435 = vsub.f32 %v1425, %v1433
    %v1436 = vmul.f32 %v1434, 1.442695
    %v1437 = vpow.pop %v1436
    %v1438 = vmul.f32 %v1435, 1.442695
    %v1439 = vpow.pop %v1438
    %v1440 = vsel %vm23, %v1437, 0.0
    %1441 = vadd.xlane.f32.xlu0 %v1440
    %v1442 = vpop.xlane.xlu0 %1441
    %v1443 = vsel %vm23, %v1439, 0.0
    %1444 = vadd.xlane.f32.xlu0 %v1443
    %v1445 = vpop.xlane.xlu0 %1444
    %v1446 = vrcp.pop %v1442
    %v1447 = vrcp.pop %v1445
    %v1448 = vmul.f32 %v1437, %v1446
    %v1449 = vmul.f32 %v1439, %v1447
    %1450 = vrot.lane.b32.xlu0 %v1129, 48
    %v1451 = vpop.permute.xlu0 %1450
    %1452 = vrot.lane.b32.xlu0 %v1134, 48
    %v1453 = vpop.permute.xlu0 %1452
    %v1457 = vsel %vm23, %v1448, 0
    %v1460 = vsel %vm23, %v1449, 0
    %1462 = vmatprep.subr.mxu0 0.0
    %1463 = vmatpush1.msra.mxu0 0.0
    %1464 = vmatprep.subr.mxu0 0.0
    %1465 = vmatpush1.msra.mxu0 0.0
    %1466 = vmatprep.subr.mxu0 0.0
    %1467 = vmatpush1.msra.mxu0 0.0
    %1468 = vmatprep.subr.mxu0 0.0
    %1469 = vmatpush1.msra.mxu0 0.0
    %1470 = vmatprep.subr.mxu0 0.0
    %1471 = vmatpush1.msra.mxu0 0.0
    %1472 = vmatprep.subr.mxu0 0.0
    %1473 = vmatpush1.msra.mxu0 0.0
    %1474 = vmatprep.subr.mxu0 0.0
    %1475 = vmatpush1.msra.mxu0 0.0
    %1476 = vmatprep.subr.mxu0 0.0
    %1477 = vmatpush1.msra.mxu0 0.0
    %1478 = vmatprep.subr.mxu0 0.0
    %1479 = vmatpush1.msra.mxu0 0.0
    %1480 = vmatprep.subr.mxu0 0.0
    %1481 = vmatpush1.msra.mxu0 0.0
    %1482 = vmatprep.subr.mxu0 0.0
    %1483 = vmatpush1.msra.mxu0 0.0
    %1484 = vmatprep.subr.mxu0 0.0
    %1485 = vmatpush1.msra.mxu0 0.0
    %1486 = vmatprep.subr.mxu0 0.0
    %1487 = vmatpush1.msra.mxu0 0.0
    %1488 = vmatprep.subr.mxu0 0.0
    %1489 = vmatpush1.msra.mxu0 0.0
    %1490 = vmatprep.subr.mxu0 0.0
    %1491 = vmatpush1.msra.mxu0 %v1453
    %1492 = vmatprep.subr.mxu0 0.0
    %1493 = vmatpush1.msra.mxu0 %v1451
    %1494 = vmatprep.subr.mxu0 0.0
    %1495 = vmatpush2.msra.mxu0 0.0
    %1496 = vmatprep.subr.mxu0 0.0
    %1497 = vmatpush2.msra.mxu0 0.0
    %1498 = vmatprep.subr.mxu0 0.0
    %1499 = vmatpush2.msra.mxu0 0.0
    %1500 = vmatprep.subr.mxu0 0.0
    %1501 = vmatpush2.msra.mxu0 0.0
    %1502 = vmatprep.subr.mxu0 0.0
    %1503 = vmatpush2.msra.mxu0 0.0
    %1504 = vmatprep.subr.mxu0 0.0
    %1505 = vmatpush2.msra.mxu0 0.0
    %1506 = vmatprep.subr.mxu0 0.0
    %1507 = vmatpush2.msra.mxu0 0.0
    %1508 = vmatprep.subr.mxu0 0.0
    %1509 = vmatpush2.msra.mxu0 0.0
    %1510 = vmatprep.subr.mxu0 0.0
    %1511 = vmatpush2.msra.mxu0 0.0
    %1512 = vmatprep.subr.mxu0 0.0
    %1513 = vmatpush2.msra.mxu0 0.0
    %1514 = vmatprep.subr.mxu0 0.0
    %1515 = vmatpush2.msra.mxu0 0.0
    %1516 = vmatprep.subr.mxu0 0.0
    %1517 = vmatpush2.msra.mxu0 0.0
    %1518 = vmatprep.subr.mxu0 0.0
    %1519 = vmatpush2.msra.mxu0 0.0
    %1520 = vmatprep.subr.mxu0 0.0
    %1521 = vmatpush2.msra.mxu0 0.0
    %1522 = vmatprep.subr.mxu0 0.0
    %1523 = vmatpush2.msra.mxu0 0.0
    %1524 = vmatprep.subr.mxu0 0.0
    %1525 = vmatpush2.msra.mxu0 0.0
    %1526 = vmatprep.mubr.f32.mxu0 0.0
    %1527 = vmatmul.mubr.f32.gmra.mxu0 %v1457
    %v1528 = vpop.f32.mrf.mxu0
    %v1529 = vadd.f32 0.0, %v1528
    %v1530 = vpop.f32.mrf.mxu0
    %1531 = vmatprep.mubr.f32.mxu0 0.0
    %1532 = vmatmul.mubr.f32.gmra.mxu0 %v1460
    %v1533 = vpop.f32.mrf.mxu0
    %v1534 = vadd.f32 0.0, %v1533
    %v1535 = vpop.f32.mrf.mxu0
    %1536 = vdwg.mxu0
    %v1537 = vld [vmem:[%s1 + $0x100] sm:$0xff]
    %v1538 = vld [vmem:[%s1 + $0x108] sm:$0xff]
    %v1540 = vsel %vm23, %v1529, 0
    %v1543 = vsel %vm23, %v1534, 0
    %1545 = vmatprep.subr.mxu0 0.0
    %1546 = vmatpush1.msra.mxu0 0.0
    %1547 = vmatprep.subr.mxu0 0.0
    %1548 = vmatpush1.msra.mxu0 0.0
    %1549 = vmatprep.subr.mxu0 0.0
    %1550 = vmatpush1.msra.mxu0 0.0
    %1551 = vmatprep.subr.mxu0 0.0
    %1552 = vmatpush1.msra.mxu0 0.0
    %1553 = vmatprep.subr.mxu0 0.0
    %1554 = vmatpush1.msra.mxu0 0.0
    %1555 = vmatprep.subr.mxu0 0.0
    %1556 = vmatpush1.msra.mxu0 0.0
    %1557 = vmatprep.subr.mxu0 0.0
    %1558 = vmatpush1.msra.mxu0 0.0
    %1559 = vmatprep.subr.mxu0 0.0
    %1560 = vmatpush1.msra.mxu0 0.0
    %1561 = vmatprep.subr.mxu0 0.0
    %1562 = vmatpush1.msra.mxu0 0.0
    %1563 = vmatprep.subr.mxu0 0.0
    %1564 = vmatpush1.msra.mxu0 0.0
    %1565 = vmatprep.subr.mxu0 0.0
    %1566 = vmatpush1.msra.mxu0 0.0
    %1567 = vmatprep.subr.mxu0 0.0
    %1568 = vmatpush1.msra.mxu0 0.0
    %1569 = vmatprep.subr.mxu0 0.0
    %1570 = vmatpush1.msra.mxu0 0.0
    %1571 = vmatprep.subr.mxu0 0.0
    %1572 = vmatpush1.msra.mxu0 0.0
    %1573 = vmatprep.subr.mxu0 0.0
    %1574 = vmatpush1.msra.mxu0 %v1538
    %1575 = vmatprep.subr.mxu0 0.0
    %1576 = vmatpush1.msra.mxu0 %v1537
    %1577 = vmatprep.subr.mxu0 0.0
    %1578 = vmatpush2.msra.mxu0 0.0
    %1579 = vmatprep.subr.mxu0 0.0
    %1580 = vmatpush2.msra.mxu0 0.0
    %1581 = vmatprep.subr.mxu0 0.0
    %1582 = vmatpush2.msra.mxu0 0.0
    %1583 = vmatprep.subr.mxu0 0.0
    %1584 = vmatpush2.msra.mxu0 0.0
    %1585 = vmatprep.subr.mxu0 0.0
    %1586 = vmatpush2.msra.mxu0 0.0
    %1587 = vmatprep.subr.mxu0 0.0
    %1588 = vmatpush2.msra.mxu0 0.0
    %1589 = vmatprep.subr.mxu0 0.0
    %1590 = vmatpush2.msra.mxu0 0.0
    %1591 = vmatprep.subr.mxu0 0.0
    %1592 = vmatpush2.msra.mxu0 0.0
    %1593 = vmatprep.subr.mxu0 0.0
    %1594 = vmatpush2.msra.mxu0 0.0
    %1595 = vmatprep.subr.mxu0 0.0
    %1596 = vmatpush2.msra.mxu0 0.0
    %1597 = vmatprep.subr.mxu0 0.0
    %1598 = vmatpush2.msra.mxu0 0.0
    %1599 = vmatprep.subr.mxu0 0.0
    %1600 = vmatpush2.msra.mxu0 0.0
    %1601 = vmatprep.subr.mxu0 0.0
    %1602 = vmatpush2.msra.mxu0 0.0
    %1603 = vmatprep.subr.mxu0 0.0
    %1604 = vmatpush2.msra.mxu0 0.0
    %1605 = vmatprep.subr.mxu0 0.0
    %1606 = vmatpush2.msra.mxu0 0.0
    %1607 = vmatprep.subr.mxu0 0.0
    %1608 = vmatpush2.msra.mxu0 0.0
    %1609 = vmatprep.mubr.f32.mxu0 0.0
    %1610 = vmatmul.mubr.f32.gmra.mxu0 %v1540
    %v1611 = vpop.f32.mrf.mxu0
    %v1612 = vadd.f32 0.0, %v1611
    %v1613 = vpop.f32.mrf.mxu0
    %1614 = vmatprep.mubr.f32.mxu0 0.0
    %1615 = vmatmul.mubr.f32.gmra.mxu0 %v1543
    %v1616 = vpop.f32.mrf.mxu0
    %v1617 = vadd.f32 0.0, %v1616
    %v1618 = vpop.f32.mrf.mxu0
    %1619 = vdwg.mxu0
    %v1621 = vsel %vm23, %v1327, 0
    %v1624 = vsel %vm23, %v1332, 0
    %1626 = vmatprep.subr.mxu0 0.0
    %1627 = vmatpush1.msra.mxu0 0.0
    %1628 = vmatprep.subr.mxu0 0.0
    %1629 = vmatpush1.msra.mxu0 0.0
    %1630 = vmatprep.subr.mxu0 0.0
    %1631 = vmatpush1.msra.mxu0 0.0
    %1632 = vmatprep.subr.mxu0 0.0
    %1633 = vmatpush1.msra.mxu0 0.0
    %1634 = vmatprep.subr.mxu0 0.0
    %1635 = vmatpush1.msra.mxu0 0.0
    %1636 = vmatprep.subr.mxu0 0.0
    %1637 = vmatpush1.msra.mxu0 0.0
    %1638 = vmatprep.subr.mxu0 0.0
    %1639 = vmatpush1.msra.mxu0 0.0
    %1640 = vmatprep.subr.mxu0 0.0
    %1641 = vmatpush1.msra.mxu0 0.0
    %1642 = vmatprep.subr.mxu0 0.0
    %1643 = vmatpush1.msra.mxu0 0.0
    %1644 = vmatprep.subr.mxu0 0.0
    %1645 = vmatpush1.msra.mxu0 0.0
    %1646 = vmatprep.subr.mxu0 0.0
    %1647 = vmatpush1.msra.mxu0 0.0
    %1648 = vmatprep.subr.mxu0 0.0
    %1649 = vmatpush1.msra.mxu0 0.0
    %1650 = vmatprep.subr.mxu0 0.0
    %1651 = vmatpush1.msra.mxu0 0.0
    %1652 = vmatprep.subr.mxu0 0.0
    %1653 = vmatpush1.msra.mxu0 0.0
    %1654 = vmatprep.subr.mxu0 0.0
    %1655 = vmatpush1.msra.mxu0 %v1336
    %1656 = vmatprep.subr.mxu0 0.0
    %1657 = vmatpush1.msra.mxu0 %v1335
    %1658 = vmatprep.subr.mxu0 0.0
    %1659 = vmatpush2.msra.mxu0 0.0
    %1660 = vmatprep.subr.mxu0 0.0
    %1661 = vmatpush2.msra.mxu0 0.0
    %1662 = vmatprep.subr.mxu0 0.0
    %1663 = vmatpush2.msra.mxu0 0.0
    %1664 = vmatprep.subr.mxu0 0.0
    %1665 = vmatpush2.msra.mxu0 0.0
    %1666 = vmatprep.subr.mxu0 0.0
    %1667 = vmatpush2.msra.mxu0 0.0
    %1668 = vmatprep.subr.mxu0 0.0
    %1669 = vmatpush2.msra.mxu0 0.0
    %1670 = vmatprep.subr.mxu0 0.0
    %1671 = vmatpush2.msra.mxu0 0.0
    %1672 = vmatprep.subr.mxu0 0.0
    %1673 = vmatpush2.msra.mxu0 0.0
    %1674 = vmatprep.subr.mxu0 0.0
    %1675 = vmatpush2.msra.mxu0 0.0
    %1676 = vmatprep.subr.mxu0 0.0
    %1677 = vmatpush2.msra.mxu0 0.0
    %1678 = vmatprep.subr.mxu0 0.0
    %1679 = vmatpush2.msra.mxu0 0.0
    %1680 = vmatprep.subr.mxu0 0.0
    %1681 = vmatpush2.msra.mxu0 0.0
    %1682 = vmatprep.subr.mxu0 0.0
    %1683 = vmatpush2.msra.mxu0 0.0
    %1684 = vmatprep.subr.mxu0 0.0
    %1685 = vmatpush2.msra.mxu0 0.0
    %1686 = vmatprep.subr.mxu0 0.0
    %1687 = vmatpush2.msra.mxu0 0.0
    %1688 = vmatprep.subr.mxu0 0.0
    %1689 = vmatpush2.msra.mxu0 0.0
    %1690 = vmatprep.mubr.f32.mxu0 0.0
    %1691 = vmatmul.mubr.f32.gmra.mxu0 %v1621
    %v1692 = vpop.f32.mrf.mxu0
    %v1693 = vadd.f32 %v1612, %v1692
    %v1694 = vpop.f32.mrf.mxu0
    %1695 = vmatprep.mubr.f32.mxu0 0.0
    %1696 = vmatmul.mubr.f32.gmra.mxu0 %v1624
    %v1697 = vpop.f32.mrf.mxu0
    %v1698 = vadd.f32 %v1617, %v1697
    %v1699 = vpop.f32.mrf.mxu0
    %1700 = vdwg.mxu0
    %v1701 = vld [vmem:[%s2 + $0x9] sm:$0x1]
    %v1702 = vlaneseq
    %v1703 = vshrl.u32 %v1702, 7
    %v1704 = vsub.s32 0, %v1703
    %v1705 = vrot.slane %v1701, %v1704
    %v1706 = vadd.f32 %v1693, %v1705
    %v1707 = vadd.f32 %v1698, %v1705
    %v1708 = vadd.f32 %v1045, %v1706
    %v1709 = vadd.f32 %v1046, %v1707
    %v1710 = vld [vmem:[%s2 + $0xa] sm:$0x1]
    %v1711 = vld [vmem:[%s2 + $0xb] sm:$0x1]
    %v1712 = vsel %vm114, %v1708, 0.0
    %1713 = vadd.xlane.f32.xlu0 %v1712
    %v1714 = vpop.xlane.xlu0 %1713
    %v1715 = vsel %vm114, %v1709, 0.0
    %1716 = vadd.xlane.f32.xlu0 %v1715
    %v1717 = vpop.xlane.xlu0 %1716
    %v1718 = vmul.f32 %v1714, %v777
    %v1719 = vmul.f32 %v1717, %v777
    %v1720 = vmul.f32 %v1708, %v1708
    %v1721 = vmul.f32 %v1709, %v1709
    %v1722 = vsel %vm114, %v1720, 0.0
    %1723 = vadd.xlane.f32.xlu0 %v1722
    %v1724 = vpop.xlane.xlu0 %1723
    %v1725 = vsel %vm114, %v1721, 0.0
    %1726 = vadd.xlane.f32.xlu0 %v1725
    %v1727 = vpop.xlane.xlu0 %1726
    %v1728 = vmul.f32 %v1724, %v777
    %v1729 = vmul.f32 %v1727, %v777
    %v1730 = vmul.f32 %v1718, %v1718
    %v1731 = vmul.f32 %v1719, %v1719
    %v1732 = vsub.f32 %v1728, %v1730
    %v1733 = vsub.f32 %v1729, %v1731
    %v1734 = vsub.f32 %v1708, %v1718
    %v1735 = vsub.f32 %v1709, %v1719
    %v1736 = vadd.f32 %v1732, 1e-05
    %v1737 = vadd.f32 %v1733, 1e-05
    %v1738 = vrsqrt.pop %v1736
    %v1739 = vrsqrt.pop %v1737
    %v1740 = vmul.f32 %v1734, %v1738
    %v1741 = vmul.f32 %v1735, %v1739
    %v1742 = vlaneseq
    %v1743 = vshrl.u32 %v1742, 7
    %v1744 = vsub.s32 0, %v1743
    %v1745 = vrot.slane %v1710, %v1744
    %v1746 = vmul.f32 %v1740, %v1745
    %v1747 = vmul.f32 %v1741, %v1745
    %v1748 = vlaneseq
    %v1749 = vshrl.u32 %v1748, 7
    %v1750 = vsub.s32 0, %v1749
    %v1751 = vrot.slane %v1711, %v1750
    %v1752 = vadd.f32 %v1746, %v1751
    %v1753 = vadd.f32 %v1747, %v1751
    %v1754 = vld [vmem:[%s1 + $0x110] sm:$0xff]
    %v1755 = vld [vmem:[%s1 + $0x118] sm:$0xff]
    %v1756 = vld [vmem:[%s1 + $0x120] sm:$0xff]
    %v1757 = vld [vmem:[%s1 + $0x128] sm:$0xff]
    %v1758 = vld [vmem:[%s2 + $0xc] sm:$0x1]
    %v1759 = vlaneseq
    %v1760 = vshrl.u32 %v1759, 7
    %v1761 = vsub.s32 0, %v1760
    %v1762 = vrot.slane %v1758, %v1761
    %v1764 = vsel %vm114, %v1752, 0
    %v1767 = vsel %vm114, %v1753, 0
    %1769 = vmatprep.subr.mxu0 0.0
    %1770 = vmatpush1.msra.mxu0 0.0
    %1771 = vmatprep.subr.mxu0 0.0
    %1772 = vmatpush1.msra.mxu0 0.0
    %1773 = vmatprep.subr.mxu0 0.0
    %1774 = vmatpush1.msra.mxu0 0.0
    %1775 = vmatprep.subr.mxu0 0.0
    %1776 = vmatpush1.msra.mxu0 0.0
    %1777 = vmatprep.subr.mxu0 0.0
    %1778 = vmatpush1.msra.mxu0 0.0
    %1779 = vmatprep.subr.mxu0 0.0
    %1780 = vmatpush1.msra.mxu0 0.0
    %1781 = vmatprep.subr.mxu0 0.0
    %1782 = vmatpush1.msra.mxu0 0.0
    %1783 = vmatprep.subr.mxu0 0.0
    %1784 = vmatpush1.msra.mxu0 0.0
    %1785 = vmatprep.subr.mxu0 0.0
    %1786 = vmatpush1.msra.mxu0 0.0
    %1787 = vmatprep.subr.mxu0 0.0
    %1788 = vmatpush1.msra.mxu0 0.0
    %1789 = vmatprep.subr.mxu0 0.0
    %1790 = vmatpush1.msra.mxu0 0.0
    %1791 = vmatprep.subr.mxu0 0.0
    %1792 = vmatpush1.msra.mxu0 0.0
    %1793 = vmatprep.subr.mxu0 0.0
    %1794 = vmatpush1.msra.mxu0 %v1757
    %1795 = vmatprep.subr.mxu0 0.0
    %1796 = vmatpush1.msra.mxu0 %v1756
    %1797 = vmatprep.subr.mxu0 0.0
    %1798 = vmatpush1.msra.mxu0 %v1755
    %1799 = vmatprep.subr.mxu0 0.0
    %1800 = vmatpush1.msra.mxu0 %v1754
    %1801 = vmatprep.subr.mxu0 0.0
    %1802 = vmatpush2.msra.mxu0 0.0
    %1803 = vmatprep.subr.mxu0 0.0
    %1804 = vmatpush2.msra.mxu0 0.0
    %1805 = vmatprep.subr.mxu0 0.0
    %1806 = vmatpush2.msra.mxu0 0.0
    %1807 = vmatprep.subr.mxu0 0.0
    %1808 = vmatpush2.msra.mxu0 0.0
    %1809 = vmatprep.subr.mxu0 0.0
    %1810 = vmatpush2.msra.mxu0 0.0
    %1811 = vmatprep.subr.mxu0 0.0
    %1812 = vmatpush2.msra.mxu0 0.0
    %1813 = vmatprep.subr.mxu0 0.0
    %1814 = vmatpush2.msra.mxu0 0.0
    %1815 = vmatprep.subr.mxu0 0.0
    %1816 = vmatpush2.msra.mxu0 0.0
    %1817 = vmatprep.subr.mxu0 0.0
    %1818 = vmatpush2.msra.mxu0 0.0
    %1819 = vmatprep.subr.mxu0 0.0
    %1820 = vmatpush2.msra.mxu0 0.0
    %1821 = vmatprep.subr.mxu0 0.0
    %1822 = vmatpush2.msra.mxu0 0.0
    %1823 = vmatprep.subr.mxu0 0.0
    %1824 = vmatpush2.msra.mxu0 0.0
    %1825 = vmatprep.subr.mxu0 0.0
    %1826 = vmatpush2.msra.mxu0 0.0
    %1827 = vmatprep.subr.mxu0 0.0
    %1828 = vmatpush2.msra.mxu0 0.0
    %1829 = vmatprep.subr.mxu0 0.0
    %1830 = vmatpush2.msra.mxu0 0.0
    %1831 = vmatprep.subr.mxu0 0.0
    %1832 = vmatpush2.msra.mxu0 0.0
    %1833 = vmatprep.mubr.f32.mxu0 0.0
    %1834 = vmatmul.mubr.f32.gmra.mxu0 %v1764
    %v1835 = vpop.f32.mrf.mxu0
    %v1836 = vadd.f32 %v1762, %v1835
    %v1837 = vpop.f32.mrf.mxu0
    %1838 = vmatprep.mubr.f32.mxu0 0.0
    %1839 = vmatmul.mubr.f32.gmra.mxu0 %v1767
    %v1840 = vpop.f32.mrf.mxu0
    %v1841 = vadd.f32 %v1762, %v1840
    %v1842 = vpop.f32.mrf.mxu0
    %1843 = vdwg.mxu0
    %v1844 = vmax.f32 %v1836, 0.0
    %v1845 = vmax.f32 %v1841, 0.0
    %v1846 = vld [vmem:[%s1 + $0x130] sm:$0xff]
    %v1847 = vld [vmem:[%s1 + $0x138] sm:$0xff]
    %v1848 = vld [vmem:[%s1 + $0x140] sm:$0xff]
    %v1849 = vld [vmem:[%s1 + $0x148] sm:$0xff]
    %v1850 = vld [vmem:[%s1 + $0x150] sm:$0xff]
    %v1851 = vld [vmem:[%s1 + $0x158] sm:$0xff]
    %v1852 = vld [vmem:[%s1 + $0x160] sm:$0xff]
    %v1853 = vld [vmem:[%s1 + $0x168] sm:$0xff]
    %v1854 = vld [vmem:[%s2 + $0xd] sm:$0x1]
    %v1855 = vlaneseq
    %v1856 = vshrl.u32 %v1855, 7
    %v1857 = vsub.s32 0, %v1856
    %v1858 = vrot.slane %v1854, %v1857
    %v1860 = vsel %vm919, %v1844, 0
    %v1863 = vsel %vm919, %v1845, 0
    %1865 = vmatprep.subr.mxu0 0.0
    %1866 = vmatpush1.msra.mxu0 0.0
    %1867 = vmatprep.subr.mxu0 0.0
    %1868 = vmatpush1.msra.mxu0 0.0
    %1869 = vmatprep.subr.mxu0 0.0
    %1870 = vmatpush1.msra.mxu0 0.0
    %1871 = vmatprep.subr.mxu0 0.0
    %1872 = vmatpush1.msra.mxu0 0.0
    %1873 = vmatprep.subr.mxu0 0.0
    %1874 = vmatpush1.msra.mxu0 0.0
    %1875 = vmatprep.subr.mxu0 0.0
    %1876 = vmatpush1.msra.mxu0 0.0
    %1877 = vmatprep.subr.mxu0 0.0
    %1878 = vmatpush1.msra.mxu0 0.0
    %1879 = vmatprep.subr.mxu0 0.0
    %1880 = vmatpush1.msra.mxu0 0.0
    %1881 = vmatprep.subr.mxu0 0.0
    %1882 = vmatpush1.msra.mxu0 %v1853
    %1883 = vmatprep.subr.mxu0 0.0
    %1884 = vmatpush1.msra.mxu0 %v1852
    %1885 = vmatprep.subr.mxu0 0.0
    %1886 = vmatpush1.msra.mxu0 %v1851
    %1887 = vmatprep.subr.mxu0 0.0
    %1888 = vmatpush1.msra.mxu0 %v1850
    %1889 = vmatprep.subr.mxu0 0.0
    %1890 = vmatpush1.msra.mxu0 %v1849
    %1891 = vmatprep.subr.mxu0 0.0
    %1892 = vmatpush1.msra.mxu0 %v1848
    %1893 = vmatprep.subr.mxu0 0.0
    %1894 = vmatpush1.msra.mxu0 %v1847
    %1895 = vmatprep.subr.mxu0 0.0
    %1896 = vmatpush1.msra.mxu0 %v1846
    %1897 = vmatprep.subr.mxu0 0.0
    %1898 = vmatpush2.msra.mxu0 0.0
    %1899 = vmatprep.subr.mxu0 0.0
    %1900 = vmatpush2.msra.mxu0 0.0
    %1901 = vmatprep.subr.mxu0 0.0
    %1902 = vmatpush2.msra.mxu0 0.0
    %1903 = vmatprep.subr.mxu0 0.0
    %1904 = vmatpush2.msra.mxu0 0.0
    %1905 = vmatprep.subr.mxu0 0.0
    %1906 = vmatpush2.msra.mxu0 0.0
    %1907 = vmatprep.subr.mxu0 0.0
    %1908 = vmatpush2.msra.mxu0 0.0
    %1909 = vmatprep.subr.mxu0 0.0
    %1910 = vmatpush2.msra.mxu0 0.0
    %1911 = vmatprep.subr.mxu0 0.0
    %1912 = vmatpush2.msra.mxu0 0.0
    %1913 = vmatprep.subr.mxu0 0.0
    %1914 = vmatpush2.msra.mxu0 0.0
    %1915 = vmatprep.subr.mxu0 0.0
    %1916 = vmatpush2.msra.mxu0 0.0
    %1917 = vmatprep.subr.mxu0 0.0
    %1918 = vmatpush2.msra.mxu0 0.0
    %1919 = vmatprep.subr.mxu0 0.0
    %1920 = vmatpush2.msra.mxu0 0.0
    %1921 = vmatprep.subr.mxu0 0.0
    %1922 = vmatpush2.msra.mxu0 0.0
    %1923 = vmatprep.subr.mxu0 0.0
    %1924 = vmatpush2.msra.mxu0 0.0
    %1925 = vmatprep.subr.mxu0 0.0
    %1926 = vmatpush2.msra.mxu0 0.0
    %1927 = vmatprep.subr.mxu0 0.0
    %1928 = vmatpush2.msra.mxu0 0.0
    %1929 = vmatprep.mubr.f32.mxu0 0.0
    %1930 = vmatmul.mubr.f32.gmra.mxu0 %v1860
    %v1931 = vpop.f32.mrf.mxu0
    %v1932 = vadd.f32 %v1858, %v1931
    %v1933 = vpop.f32.mrf.mxu0
    %1934 = vmatprep.mubr.f32.mxu0 0.0
    %1935 = vmatmul.mubr.f32.gmra.mxu0 %v1863
    %v1936 = vpop.f32.mrf.mxu0
    %v1937 = vadd.f32 %v1858, %v1936
    %v1938 = vpop.f32.mrf.mxu0
    %1939 = vdwg.mxu0
    %v1940 = vadd.f32 %v1752, %v1932
    %v1941 = vadd.f32 %v1753, %v1937
    %v1942 = vld [vmem:[%s2 + $0xe] sm:$0x1]
    %v1943 = vld [vmem:[%s2 + $0xf] sm:$0x1]
    %v1944 = vsel %vm114, %v1940, 0.0
    %1945 = vadd.xlane.f32.xlu0 %v1944
    %v1946 = vpop.xlane.xlu0 %1945
    %v1947 = vsel %vm114, %v1941, 0.0
    %1948 = vadd.xlane.f32.xlu0 %v1947
    %v1949 = vpop.xlane.xlu0 %1948
    %v1950 = vmul.f32 %v1946, %v777
    %v1951 = vmul.f32 %v1949, %v777
    %v1952 = vmul.f32 %v1940, %v1940
    %v1953 = vmul.f32 %v1941, %v1941
    %v1954 = vsel %vm114, %v1952, 0.0
    %1955 = vadd.xlane.f32.xlu0 %v1954
    %v1956 = vpop.xlane.xlu0 %1955
    %v1957 = vsel %vm114, %v1953, 0.0
    %1958 = vadd.xlane.f32.xlu0 %v1957
    %v1959 = vpop.xlane.xlu0 %1958
    %v1960 = vmul.f32 %v1956, %v777
    %v1961 = vmul.f32 %v1959, %v777
    %v1962 = vmul.f32 %v1950, %v1950
    %v1963 = vmul.f32 %v1951, %v1951
    %v1964 = vsub.f32 %v1960, %v1962
    %v1965 = vsub.f32 %v1961, %v1963
    %v1966 = vsub.f32 %v1940, %v1950
    %v1967 = vsub.f32 %v1941, %v1951
    %v1968 = vadd.f32 %v1964, 1e-05
    %v1969 = vadd.f32 %v1965, 1e-05
    %v1970 = vrsqrt.pop %v1968
    %v1971 = vrsqrt.pop %v1969
    %v1972 = vmul.f32 %v1966, %v1970
    %v1973 = vmul.f32 %v1967, %v1971
    %v1974 = vlaneseq
    %v1975 = vshrl.u32 %v1974, 7
    %v1976 = vsub.s32 0, %v1975
    %v1977 = vrot.slane %v1942, %v1976
    %v1978 = vmul.f32 %v1972, %v1977
    %v1979 = vmul.f32 %v1973, %v1977
    %v1980 = vlaneseq
    %v1981 = vshrl.u32 %v1980, 7
    %v1982 = vsub.s32 0, %v1981
    %v1983 = vrot.slane %v1943, %v1982
    %v1984 = vadd.f32 %v1978, %v1983
    %v1985 = vadd.f32 %v1979, %v1983
    %v1986 = vld [vmem:[%s2 + $0x10] sm:$0x1]
    %v1987 = vld [vmem:[%s2 + $0x11] sm:$0x1]
    %v1988 = vsel %vm114, %v1984, 0.0
    %1989 = vadd.xlane.f32.xlu0 %v1988
    %v1990 = vpop.xlane.xlu0 %1989
    %v1991 = vsel %vm114, %v1985, 0.0
    %1992 = vadd.xlane.f32.xlu0 %v1991
    %v1993 = vpop.xlane.xlu0 %1992
    %v1994 = vmul.f32 %v1990, %v777
    %v1995 = vmul.f32 %v1993, %v777
    %v1996 = vmul.f32 %v1984, %v1984
    %v1997 = vmul.f32 %v1985, %v1985
    %v1998 = vsel %vm114, %v1996, 0.0
    %1999 = vadd.xlane.f32.xlu0 %v1998
    %v2000 = vpop.xlane.xlu0 %1999
    %v2001 = vsel %vm114, %v1997, 0.0
    %2002 = vadd.xlane.f32.xlu0 %v2001
    %v2003 = vpop.xlane.xlu0 %2002
    %v2004 = vmul.f32 %v2000, %v777
    %v2005 = vmul.f32 %v2003, %v777
    %v2006 = vmul.f32 %v1994, %v1994
    %v2007 = vmul.f32 %v1995, %v1995
    %v2008 = vsub.f32 %v2004, %v2006
    %v2009 = vsub.f32 %v2005, %v2007
    %v2010 = vsub.f32 %v1984, %v1994
    %v2011 = vsub.f32 %v1985, %v1995
    %v2012 = vadd.f32 %v2008, 1e-05
    %v2013 = vadd.f32 %v2009, 1e-05
    %v2014 = vrsqrt.pop %v2012
    %v2015 = vrsqrt.pop %v2013
    %v2016 = vmul.f32 %v2010, %v2014
    %v2017 = vmul.f32 %v2011, %v2015
    %v2018 = vlaneseq
    %v2019 = vshrl.u32 %v2018, 7
    %v2020 = vsub.s32 0, %v2019
    %v2021 = vrot.slane %v1986, %v2020
    %v2022 = vmul.f32 %v2016, %v2021
    %v2023 = vmul.f32 %v2017, %v2021
    %v2024 = vlaneseq
    %v2025 = vshrl.u32 %v2024, 7
    %v2026 = vsub.s32 0, %v2025
    %v2027 = vrot.slane %v1987, %v2026
    %v2028 = vadd.f32 %v2022, %v2027
    %v2029 = vadd.f32 %v2023, %v2027
    %v2030 = vsel %vm114, %v2028, -inf
    %v2031 = vrot.slane %v2030, 4
    %v2032 = vmax.f32 %v2030, %v2031
    %v2033 = vrot.slane %v2032, 2
    %v2034 = vmax.f32 %v2032, %v2033
    %v2035 = vrot.slane %v2034, 1
    %v2036 = vmax.f32 %v2034, %v2035
    %vm2037 = vcmask 253952
    %2038 = vst.msk [vmem:[#allocation2] sm:$0x1] %vm2037, %v2036
    %v2039 = vsel %vm114, %v2029, -inf
    %v2040 = vrot.slane %v2039, 4
    %v2041 = vmax.f32 %v2039, %v2040
    %v2042 = vrot.slane %v2041, 2
    %v2043 = vmax.f32 %v2041, %v2042
    %v2044 = vrot.slane %v2043, 1
    %v2045 = vmax.f32 %v2043, %v2044
    %2046 = vst.msk [vmem:[#allocation2 + $0x1] sm:$0x1] %vm2037, %v2045
    // Predicated region
    $region14: #{vit_extractor.1} parent=1 // pred_check
      _
    $region15: #{vit_extractor.1} parent=1 // pred_check_branch
      %2048 = sbr.rel (0) target = $region17
    $region16: #{vit_extractor.1} parent=1 // pred_region
      %s2050 = ssub.s32 32, 32
      %2051 = vsyncadd [#allocation3], %s2050
      %s2053 = sshll.u32 [#allocation2], 4
      %s2054 = int_to_ptr.vmem [resolvable:$true] %s2053
      %2056 = dma.vmem_to_hbm [thread:$0]  %s2054, 32, %s3, [#allocation3]
    $region17: #{vit_extractor.1} parent=1 // pred_fallthru
      _
    // Predicated region
    $region18: #{vit_extractor.1} parent=1 // pred_check
      _
    $region19: #{vit_extractor.1} parent=1 // pred_check_branch
      %2058 = sbr.rel (0) target = $region21
    $region20: #{vit_extractor.1} parent=1 // pred_region
      %2059 = dma.done [#allocation3], 32
    $region21: #{vit_extractor.1} parent=1 // pred_fallthru
      _
    %2060 = vsyncpa [#allocation3], 1

</llo_original>
